<compile_context>
chip_gen: v7x
topology: tpu7x:2x2x1
jax: 0.10.0
libtpu: 0.0.40
codegen_flags: <defaults>
</compile_context>

<pallas_src>
import math
import functools

import jax
import jax.numpy as jnp
from jax.experimental import pallas as pl
from jax.experimental.pallas import tpu as pltpu


def _attn_ffn_tile(xq_ref, k_ref, v_ref, wq_ref, w1_ref, w2_ref, out_ref, attn_ref,
                   *, n_heads, d_k, d_v, mm_dtype, eps):
    """Attention + FFN + residual + LayerNorm for one query tile.

    k_ref / v_ref: [L, H*d_k] / [L, H*d_v] refs (VMEM scratch or pipelined inputs).
    """
    scale = 1.0 / math.sqrt(d_k)
    xq = xq_ref[...].astype(mm_dtype)                                     # [tq, D]

    # Fused Q projection: one wide matmul (MXU output width = H*d_k).
    q_all = jnp.dot(xq, wq_ref[...],
                    preferred_element_type=jnp.float32).astype(mm_dtype)  # [tq, H*d_k]

    ctx_heads = []
    # TODO(synk): for n_heads >> 4, switch this static unroll to lax.fori_loop with
    # dynamic ref indexing to bound vreg live ranges.
    for h in range(n_heads):
        qh = q_all[:, h * d_k:(h + 1) * d_k]                              # [tq, d_k]
        kh = k_ref[:, h * d_k:(h + 1) * d_k]                              # [L, d_k]
        # scores = Q_h @ K_h^T, expressed as a contraction of d_k with d_k
        # (no in-kernel transpose materialization; proven lowering).
        s = jax.lax.dot_general(qh, kh,
                                dimension_numbers=(((1,), (1,)), ((), ())),
                                preferred_element_type=jnp.float32) * scale   # [tq, L]
        m = jnp.max(s, axis=-1, keepdims=True)
        e = jnp.exp(s - m)
        # approx reciprocal on the EUP slot; rows sum to 1 only approximately.
        a = e * pl.reciprocal(jnp.sum(e, axis=-1, keepdims=True), approx=True)
        attn_ref[h] = a.astype(attn_ref.dtype)                            # lane-dense [tq, L]
        vh = v_ref[:, h * d_v:(h + 1) * d_v]                              # [L, d_v]
        ctx_heads.append(jnp.dot(a.astype(mm_dtype), vh,
                                 preferred_element_type=jnp.float32))     # [tq, d_v] f32

    # "Concat heads": value-level lane concatenate (no masked column stores).
    ctx = ctx_heads[0] if n_heads == 1 else jnp.concatenate(ctx_heads, axis=-1)  # [tq, D]

    # Position-wise FFN + residual + LayerNorm (f32 epilogue).
    h1 = jnp.maximum(jnp.dot(ctx.astype(mm_dtype), w1_ref[...],
                             preferred_element_type=jnp.float32), 0.0)
    ff = jnp.dot(h1.astype(mm_dtype), w2_ref[...],
                 preferred_element_type=jnp.float32)
    y = ff + ctx
    mu = jnp.mean(y, axis=-1, keepdims=True)
    var = jnp.mean(jnp.square(y - mu), axis=-1, keepdims=True)
    out_ref[...] = ((y - mu) * jax.lax.rsqrt(var + eps)).astype(out_ref.dtype)


def _encoder_layer_kernel_fused_kv(xq_ref, xfull_ref, wq_ref, wk_ref, wv_ref,
                                   w1_ref, w2_ref, out_ref, attn_ref,
                                   k_sc, v_sc,
                                   *, n_heads, d_k, d_v, mm_dtype, eps=1e-5):
    # K/V projections once per batch element (fused wide matmuls), kept resident
    # in lane-dense VMEM scratch and reused by every later q-tile.
    @pl.when(pl.program_id(1) == 0)
    def _():
        xf = xfull_ref[...].astype(mm_dtype)                              # [L, D]
        k_sc[...] = jnp.dot(xf, wk_ref[...],
                            preferred_element_type=jnp.float32).astype(mm_dtype)
        v_sc[...] = jnp.dot(xf, wv_ref[...],
                            preferred_element_type=jnp.float32).astype(mm_dtype)

    _attn_ffn_tile(xq_ref, k_sc, v_sc, wq_ref, w1_ref, w2_ref, out_ref, attn_ref,
                   n_heads=n_heads, d_k=d_k, d_v=d_v, mm_dtype=mm_dtype, eps=eps)


def _encoder_layer_kernel_hoisted_kv(xq_ref, k_ref, v_ref, wq_ref, w1_ref, w2_ref,
                                     out_ref, attn_ref,
                                     *, n_heads, d_k, d_v, mm_dtype, eps=1e-5):
    _attn_ffn_tile(xq_ref, k_ref, v_ref, wq_ref, w1_ref, w2_ref, out_ref, attn_ref,
                   n_heads=n_heads, d_k=d_k, d_v=d_v, mm_dtype=mm_dtype, eps=eps)


def encoder_layer(x, wq, wk, wv, w1, w2, *, n_heads, d_k, d_v,
                  block_q=128, matmul_dtype=jnp.bfloat16,
                  attn_dtype=jnp.bfloat16, precompute_kv=False,
                  vmem_limit_bytes=None):
    """x: [B, L, d_model]; weights in PyTorch layout [out_features, in_features].

    precompute_kv=True: K/V computed by one XLA batched GEMM outside the kernel
    (both grid axes "parallel" — preferred on v7x / when B < number of cores).
    """
    B, L, D = x.shape
    assert n_heads * d_v == D, "module requires n_heads*d_v == d_model (residual/LayerNorm)"
    assert wq.shape == (n_heads * d_k, D)
    assert wk.shape == (n_heads * d_k, D)
    assert wv.shape == (n_heads * d_v, D)
    d_ff = w1.shape[0]
    assert w1.shape == (d_ff, D) and w2.shape == (D, d_ff)
    HK, HV = n_heads * d_k, n_heads * d_v

    # query tile; a non-divisible L gets a masked last tile (cdiv grid).
    tq = min(block_q, L)
    nq = pl.cdiv(L, tq)

    # ---- wrapper-side layout plumbing (free): fused, input-major weights ----
    wq_f = jnp.transpose(wq).astype(matmul_dtype)   # [D, H*d_k]
    wk_f = jnp.transpose(wk).astype(matmul_dtype)   # [D, H*d_k]
    wv_f = jnp.transpose(wv).astype(matmul_dtype)   # [D, H*d_v]
    w1t = jnp.transpose(w1).astype(matmul_dtype)    # [D, d_ff]
    w2t = jnp.transpose(w2).astype(matmul_dtype)    # [d_ff, D]

    resident = pl.Buffered(1)   # grid-invariant blocks: single-buffered (VMEM saving)

    out_shapes = (
        jax.ShapeDtypeStruct((B, L, D), x.dtype),                 # enc_outputs
        jax.ShapeDtypeStruct((B, n_heads, L, L), attn_dtype),     # attention probs
    )
    out_specs = [
        pl.BlockSpec((pl.Squeezed(), tq, D), lambda b, q: (b, q, 0)),
        pl.BlockSpec((pl.Squeezed(), n_heads, tq, L), lambda b, q: (b, 0, q, 0)),
    ]

    if precompute_kv:
        xm = x.astype(matmul_dtype)
        dn = (((2,), (0,)), ((), ()))
        k = jax.lax.dot_general(xm, wk_f, dn,
                                preferred_element_type=jnp.float32).astype(matmul_dtype)
        v = jax.lax.dot_general(xm, wv_f, dn,
                                preferred_element_type=jnp.float32).astype(matmul_dtype)
        kernel = functools.partial(_encoder_layer_kernel_hoisted_kv,
                                   n_heads=n_heads, d_k=d_k, d_v=d_v, mm_dtype=matmul_dtype)
        in_specs = [
            pl.BlockSpec((pl.Squeezed(), tq, D), lambda b, q: (b, q, 0)),
            pl.BlockSpec((pl.Squeezed(), L, HK), lambda b, q: (b, 0, 0)),
            pl.BlockSpec((pl.Squeezed(), L, HV), lambda b, q: (b, 0, 0)),
            pl.BlockSpec((D, HK), lambda b, q: (0, 0), pipeline_mode=resident),
            pl.BlockSpec((D, d_ff), lambda b, q: (0, 0), pipeline_mode=resident),
            pl.BlockSpec((d_ff, D), lambda b, q: (0, 0), pipeline_mode=resident),
        ]
        operands = (x, k, v, wq_f, w1t, w2t)
        scratch = []
        semantics = ("parallel", "parallel")
    else:
        kernel = functools.partial(_encoder_layer_kernel_fused_kv,
                                   n_heads=n_heads, d_k=d_k, d_v=d_v, mm_dtype=matmul_dtype)
        in_specs = [
            pl.BlockSpec((pl.Squeezed(), tq, D), lambda b, q: (b, q, 0)),
            # full x for K/V: re-DMA'd only when the batch index changes
            pl.BlockSpec((pl.Squeezed(), L, D), lambda b, q: (b, 0, 0),
                         pipeline_mode=resident),
            pl.BlockSpec((D, HK), lambda b, q: (0, 0), pipeline_mode=resident),
            pl.BlockSpec((D, HK), lambda b, q: (0, 0), pipeline_mode=resident),
            pl.BlockSpec((D, HV), lambda b, q: (0, 0), pipeline_mode=resident),
            pl.BlockSpec((D, d_ff), lambda b, q: (0, 0), pipeline_mode=resident),
            pl.BlockSpec((d_ff, D), lambda b, q: (0, 0), pipeline_mode=resident),
        ]
        operands = (x, x, wq_f, wk_f, wv_f, w1t, w2t)
        scratch = [pltpu.VMEM((L, HK), matmul_dtype),   # K, lane-dense, per batch elem
                   pltpu.VMEM((L, HV), matmul_dtype)]   # V, lane-dense, per batch elem
        # q-axis must be "arbitrary": K/V scratch is filled at q==0 and reused.
        semantics = ("parallel", "arbitrary")

    cparams = dict(dimension_semantics=semantics)
    if vmem_limit_bytes is not None:
        cparams["vmem_limit_bytes"] = vmem_limit_bytes

    return pl.pallas_call(
        kernel,
        out_shape=out_shapes,
        grid_spec=pltpu.PrefetchScalarGridSpec(
            num_scalar_prefetch=0,
            grid=(B, nq),
            in_specs=in_specs,
            out_specs=out_specs,
            scratch_shapes=scratch,
        ),
        compiler_params=pltpu.CompilerParams(**cparams),
    )(*operands)


def _reference(x, wq, wk, wv, w1, w2, *, n_heads, d_k, d_v, eps=1e-5):
    """Pure-JAX f32 reference mirroring the PyTorch module."""
    B, L, D = x.shape

    def heads(w, dh):
        y = x @ w.T
        return y.reshape(B, L, n_heads, dh).transpose(0, 2, 1, 3)

    q, k, v = heads(wq, d_k), heads(wk, d_k), heads(wv, d_v)
    s = jnp.einsum('bhqd,bhkd->bhqk', q, k) / jnp.sqrt(jnp.float32(d_k))
    a = jax.nn.softmax(s, axis=-1)
    ctx = jnp.einsum('bhqk,bhkd->bhqd', a, v).transpose(0, 2, 1, 3).reshape(B, L, n_heads * d_v)
    ff = jnp.maximum(ctx @ w1.T, 0.0) @ w2.T
    y = ff + ctx
    mu = y.mean(-1, keepdims=True)
    var = ((y - mu) ** 2).mean(-1, keepdims=True)
    return (y - mu) / jnp.sqrt(var + eps), a


if __name__ == "__main__":
    # Small shapes consistent with the module: n_heads*d_v == d_model required.
    B, L = 2, 8
    d_model, d_k, d_v, d_ff, n_heads = 32, 8, 8, 64, 4

    key = jax.random.PRNGKey(0)
    kx, kq, kk, kv, k1, k2 = jax.random.split(key, 6)

    x = jax.random.normal(kx, (B, L, d_model), dtype=jnp.float32)

    def init(k, shape):
        bound = 1.0 / math.sqrt(shape[1])
        return jax.random.uniform(k, shape, jnp.float32, -bound, bound)

    wq = init(kq, (n_heads * d_k, d_model))
    wk = init(kk, (n_heads * d_k, d_model))
    wv = init(kv, (n_heads * d_v, d_model))
    w1 = init(k1, (d_ff, d_model))
    w2 = init(k2, (d_model, d_ff))

    ref_out, ref_attn = _reference(x, wq, wk, wv, w1, w2,
                                   n_heads=n_heads, d_k=d_k, d_v=d_v)

    # Exercise both layouts: in-kernel resident K/V (v5e/v6e default) and the
    # hoisted-K/V fully-parallel variant (preferred on v7x).
    for pkv in (False, True):
        enc_out, attn = encoder_layer(x, wq, wk, wv, w1, w2,
                                      n_heads=n_heads, d_k=d_k, d_v=d_v,
                                      precompute_kv=pkv)
        jax.block_until_ready((enc_out, attn))
        assert enc_out.shape == (B, L, d_model)
        assert attn.shape == (B, n_heads, L, L)
        # Loose checks: bf16 matmul inputs, bf16 attention output, approx reciprocal.
        assert float(jnp.max(jnp.abs(enc_out - ref_out))) < 0.2, "enc_out mismatch"
        assert float(jnp.max(jnp.abs(attn.astype(jnp.float32) - ref_attn))) < 0.05, \
            "attn mismatch"

    print("KERNEL_OK")
</pallas_src>

<mosaic_0001>
module attributes {stable_mosaic.version = 11 : i64} {
  func.func @_encoder_layer_kernel_fused_kv(%arg0: i32, %arg1: i32, %arg2: memref<1x8x32xf32, #tpu.memory_space<vmem>>, %arg3: memref<1x8x32xf32, #tpu.memory_space<vmem>>, %arg4: memref<32x32xbf16, #tpu.memory_space<vmem>>, %arg5: memref<32x32xbf16, #tpu.memory_space<vmem>>, %arg6: memref<32x32xbf16, #tpu.memory_space<vmem>>, %arg7: memref<32x64xbf16, #tpu.memory_space<vmem>>, %arg8: memref<64x32xbf16, #tpu.memory_space<vmem>>, %arg9: memref<1x8x32xf32, #tpu.memory_space<vmem>>, %arg10: memref<1x4x8x8xbf16, #tpu.memory_space<vmem>>, %arg11: memref<8x32xbf16, #tpu.memory_space<vmem>>, %arg12: memref<8x32xbf16, #tpu.memory_space<vmem>>) attributes {dimension_semantics = [#tpu.dimension_semantics<parallel>, #tpu.dimension_semantics<arbitrary>], iteration_bounds = array<i64: 2, 1>, scalar_prefetch = 0 : i64, scratch_operands = 2 : i64, tpu.core_type = #tpu.core_type<tc>, window_params = [{transform_indices = @transform_0, window_bounds = array<i64: 1, 8, 32>}, {pipeline_mode = #tpu.pipeline_mode<synchronous>, transform_indices = @transform_1, window_bounds = array<i64: 1, 8, 32>}, {pipeline_mode = #tpu.pipeline_mode<synchronous>, transform_indices = @transform_2, window_bounds = array<i64: 32, 32>}, {pipeline_mode = #tpu.pipeline_mode<synchronous>, transform_indices = @transform_3, window_bounds = array<i64: 32, 32>}, {pipeline_mode = #tpu.pipeline_mode<synchronous>, transform_indices = @transform_4, window_bounds = array<i64: 32, 32>}, {pipeline_mode = #tpu.pipeline_mode<synchronous>, transform_indices = @transform_5, window_bounds = array<i64: 32, 64>}, {pipeline_mode = #tpu.pipeline_mode<synchronous>, transform_indices = @transform_6, window_bounds = array<i64: 64, 32>}, {transform_indices = @transform_7, window_bounds = array<i64: 1, 8, 32>}, {transform_indices = @transform_8, window_bounds = array<i64: 1, 4, 8, 8>}]} {
    %c0_i32 = arith.constant 0 : i32
    %0 = arith.cmpi eq, %arg1, %c0_i32 : i32
    %1 = arith.extui %0 : i1 to i32
    %c0_i32_0 = arith.constant 0 : i32
    %2 = arith.cmpi ne, %1, %c0_i32_0 : i32
    scf.if %2 {
      %c0_66 = arith.constant 0 : index
      %c0_67 = arith.constant 0 : index
      %c0_68 = arith.constant 0 : index
      %128 = vector.load %arg3[%c0_66, %c0_67, %c0_68] : memref<1x8x32xf32, #tpu.memory_space<vmem>>, vector<1x8x32xf32>
      %129 = vector.shape_cast %128 : vector<1x8x32xf32> to vector<8x32xf32>
      %130 = arith.truncf %129 : vector<8x32xf32> to vector<8x32xbf16>
      %c0_69 = arith.constant 0 : index
      %c0_70 = arith.constant 0 : index
      %131 = vector.load %arg5[%c0_69, %c0_70] : memref<32x32xbf16, #tpu.memory_space<vmem>>, vector<32x32xbf16>
      %cst_71 = arith.constant dense<0.000000e+00> : vector<8x32xf32>
      %132 = tpu.matmul %130, %131, %cst_71 {dimension_numbers = #tpu.dot_dimension_numbers<[1], [0], [0], [1], [0, 0, 1, 1], [], []>} : vector<8x32xbf16>, vector<32x32xbf16>, vector<8x32xf32> -> vector<8x32xf32>
      %133 = arith.truncf %132 : vector<8x32xf32> to vector<8x32xbf16>
      %c0_72 = arith.constant 0 : index
      %c0_73 = arith.constant 0 : index
      %134 = vector.load %arg11[%c0_72, %c0_73] : memref<8x32xbf16, #tpu.memory_space<vmem>>, vector<8x32xbf16>
      tpu.vector_store %arg11[%c0_72, %c0_73], %133 {strides = array<i32>} : memref<8x32xbf16, #tpu.memory_space<vmem>>, vector<8x32xbf16>,
      %c0_74 = arith.constant 0 : index
      %c0_75 = arith.constant 0 : index
      %135 = vector.load %arg6[%c0_74, %c0_75] : memref<32x32xbf16, #tpu.memory_space<vmem>>, vector<32x32xbf16>
      %cst_76 = arith.constant dense<0.000000e+00> : vector<8x32xf32>
      %136 = tpu.matmul %130, %135, %cst_76 {dimension_numbers = #tpu.dot_dimension_numbers<[1], [0], [0], [1], [0, 0, 1, 1], [], []>} : vector<8x32xbf16>, vector<32x32xbf16>, vector<8x32xf32> -> vector<8x32xf32>
      %137 = arith.truncf %136 : vector<8x32xf32> to vector<8x32xbf16>
      %c0_77 = arith.constant 0 : index
      %c0_78 = arith.constant 0 : index
      %138 = vector.load %arg12[%c0_77, %c0_78] : memref<8x32xbf16, #tpu.memory_space<vmem>>, vector<8x32xbf16>
      tpu.vector_store %arg12[%c0_77, %c0_78], %137 {strides = array<i32>} : memref<8x32xbf16, #tpu.memory_space<vmem>>, vector<8x32xbf16>,
    } else {
    }
    %c0 = arith.constant 0 : index
    %c0_1 = arith.constant 0 : index
    %c0_2 = arith.constant 0 : index
    %3 = vector.load %arg2[%c0, %c0_1, %c0_2] : memref<1x8x32xf32, #tpu.memory_space<vmem>>, vector<1x8x32xf32>
    %4 = vector.shape_cast %3 : vector<1x8x32xf32> to vector<8x32xf32>
    %5 = arith.truncf %4 : vector<8x32xf32> to vector<8x32xbf16>
    %c0_3 = arith.constant 0 : index
    %c0_4 = arith.constant 0 : index
    %6 = vector.load %arg4[%c0_3, %c0_4] : memref<32x32xbf16, #tpu.memory_space<vmem>>, vector<32x32xbf16>
    %cst = arith.constant dense<0.000000e+00> : vector<8x32xf32>
    %7 = tpu.matmul %5, %6, %cst {dimension_numbers = #tpu.dot_dimension_numbers<[1], [0], [0], [1], [0, 0, 1, 1], [], []>} : vector<8x32xbf16>, vector<32x32xbf16>, vector<8x32xf32> -> vector<8x32xf32>
    %8 = arith.truncf %7 : vector<8x32xf32> to vector<8x32xbf16>
    %9 = vector.extract_strided_slice %8 {offsets = [0, 0], sizes = [8, 8], strides = [1, 1]} : vector<8x32xbf16> to vector<8x8xbf16>
    %c0_5 = arith.constant 0 : index
    %c0_6 = arith.constant 0 : index
    %10 = vector.load %arg11[%c0_5, %c0_6] : memref<8x32xbf16, #tpu.memory_space<vmem>>, vector<8x8xbf16>
    %cst_7 = arith.constant dense<0.000000e+00> : vector<8x8xf32>
    %11 = tpu.matmul %9, %10, %cst_7 {dimension_numbers = #tpu.dot_dimension_numbers<[1], [1], [0], [0], [0, 0, 1, 0], [], []>} : vector<8x8xbf16>, vector<8x8xbf16>, vector<8x8xf32> -> vector<8x8xf32>
    %cst_8 = arith.constant 0.353553385 : f32
    %12 = vector.broadcast %cst_8 : f32 to vector<8x8xf32>
    %13 = arith.mulf %11, %12 : vector<8x8xf32>
    %cst_9 = arith.constant dense<0xFF800000> : vector<8xf32>
    %14 = vector.multi_reduction <maximumf>, %13, %cst_9 [1] : vector<8x8xf32> to vector<8xf32>
    %15 = vector.shape_cast %14 : vector<8xf32> to vector<8x1xf32>
    %16 = vector.broadcast %15 : vector<8x1xf32> to vector<8x8xf32>
    %17 = arith.subf %13, %16 : vector<8x8xf32>
    %18 = math.exp %17 : vector<8x8xf32>
    %cst_10 = arith.constant dense<0.000000e+00> : vector<8xf32>
    %19 = vector.multi_reduction <add>, %18, %cst_10 [1] : vector<8x8xf32> to vector<8xf32>
    %20 = vector.shape_cast %19 : vector<8xf32> to vector<8x1xf32>
    %21 = tpu.reciprocal %20 {approx = true} : vector<8x1xf32> -> vector<8x1xf32>
    %22 = vector.broadcast %21 : vector<8x1xf32> to vector<8x8xf32>
    %23 = arith.mulf %18, %22 : vector<8x8xf32>
    %24 = arith.truncf %23 : vector<8x8xf32> to vector<8x8xbf16>
    %c0_11 = arith.constant 0 : index
    %c0_12 = arith.constant 0 : index
    %c0_13 = arith.constant 0 : index
    %c0_14 = arith.constant 0 : index
    %25 = vector.load %arg10[%c0_11, %c0_12, %c0_13, %c0_14] : memref<1x4x8x8xbf16, #tpu.memory_space<vmem>>, vector<1x1x8x8xbf16>
    %26 = vector.shape_cast %25 : vector<1x1x8x8xbf16> to vector<8x8xbf16>
    %27 = vector.shape_cast %24 : vector<8x8xbf16> to vector<1x1x8x8xbf16>
    tpu.vector_store %arg10[%c0_11, %c0_12, %c0_13, %c0_14], %27 {strides = array<i32>} : memref<1x4x8x8xbf16, #tpu.memory_space<vmem>>, vector<1x1x8x8xbf16>,
    %c0_15 = arith.constant 0 : index
    %c0_16 = arith.constant 0 : index
    %28 = vector.load %arg12[%c0_15, %c0_16] : memref<8x32xbf16, #tpu.memory_space<vmem>>, vector<8x8xbf16>
    %29 = arith.truncf %23 : vector<8x8xf32> to vector<8x8xbf16>
    %cst_17 = arith.constant dense<0.000000e+00> : vector<8x8xf32>
    %30 = tpu.matmul %29, %28, %cst_17 {dimension_numbers = #tpu.dot_dimension_numbers<[1], [0], [0], [1], [0, 0, 1, 1], [], []>} : vector<8x8xbf16>, vector<8x8xbf16>, vector<8x8xf32> -> vector<8x8xf32>
    %31 = vector.extract_strided_slice %8 {offsets = [0, 8], sizes = [8, 8], strides = [1, 1]} : vector<8x32xbf16> to vector<8x8xbf16>
    %c0_18 = arith.constant 0 : index
    %c8 = arith.constant 8 : index
    %32 = vector.load %arg11[%c0_18, %c8] : memref<8x32xbf16, #tpu.memory_space<vmem>>, vector<8x8xbf16>
    %cst_19 = arith.constant dense<0.000000e+00> : vector<8x8xf32>
    %33 = tpu.matmul %31, %32, %cst_19 {dimension_numbers = #tpu.dot_dimension_numbers<[1], [1], [0], [0], [0, 0, 1, 0], [], []>} : vector<8x8xbf16>, vector<8x8xbf16>, vector<8x8xf32> -> vector<8x8xf32>
    %cst_20 = arith.constant 0.353553385 : f32
    %34 = vector.broadcast %cst_20 : f32 to vector<8x8xf32>
    %35 = arith.mulf %33, %34 : vector<8x8xf32>
    %cst_21 = arith.constant dense<0xFF800000> : vector<8xf32>
    %36 = vector.multi_reduction <maximumf>, %35, %cst_21 [1] : vector<8x8xf32> to vector<8xf32>
    %37 = vector.shape_cast %36 : vector<8xf32> to vector<8x1xf32>
    %38 = vector.broadcast %37 : vector<8x1xf32> to vector<8x8xf32>
    %39 = arith.subf %35, %38 : vector<8x8xf32>
    %40 = math.exp %39 : vector<8x8xf32>
    %cst_22 = arith.constant dense<0.000000e+00> : vector<8xf32>
    %41 = vector.multi_reduction <add>, %40, %cst_22 [1] : vector<8x8xf32> to vector<8xf32>
    %42 = vector.shape_cast %41 : vector<8xf32> to vector<8x1xf32>
    %43 = tpu.reciprocal %42 {approx = true} : vector<8x1xf32> -> vector<8x1xf32>
    %44 = vector.broadcast %43 : vector<8x1xf32> to vector<8x8xf32>
    %45 = arith.mulf %40, %44 : vector<8x8xf32>
    %46 = arith.truncf %45 : vector<8x8xf32> to vector<8x8xbf16>
    %c0_23 = arith.constant 0 : index
    %c1 = arith.constant 1 : index
    %c0_24 = arith.constant 0 : index
    %c0_25 = arith.constant 0 : index
    %47 = vector.load %arg10[%c0_23, %c1, %c0_24, %c0_25] : memref<1x4x8x8xbf16, #tpu.memory_space<vmem>>, vector<1x1x8x8xbf16>
    %48 = vector.shape_cast %47 : vector<1x1x8x8xbf16> to vector<8x8xbf16>
    %49 = vector.shape_cast %46 : vector<8x8xbf16> to vector<1x1x8x8xbf16>
    tpu.vector_store %arg10[%c0_23, %c1, %c0_24, %c0_25], %49 {strides = array<i32>} : memref<1x4x8x8xbf16, #tpu.memory_space<vmem>>, vector<1x1x8x8xbf16>,
    %c0_26 = arith.constant 0 : index
    %c8_27 = arith.constant 8 : index
    %50 = vector.load %arg12[%c0_26, %c8_27] : memref<8x32xbf16, #tpu.memory_space<vmem>>, vector<8x8xbf16>
    %51 = arith.truncf %45 : vector<8x8xf32> to vector<8x8xbf16>
    %cst_28 = arith.constant dense<0.000000e+00> : vector<8x8xf32>
    %52 = tpu.matmul %51, %50, %cst_28 {dimension_numbers = #tpu.dot_dimension_numbers<[1], [0], [0], [1], [0, 0, 1, 1], [], []>} : vector<8x8xbf16>, vector<8x8xbf16>, vector<8x8xf32> -> vector<8x8xf32>
    %53 = vector.extract_strided_slice %8 {offsets = [0, 16], sizes = [8, 8], strides = [1, 1]} : vector<8x32xbf16> to vector<8x8xbf16>
    %c0_29 = arith.constant 0 : index
    %c16 = arith.constant 16 : index
    %54 = vector.load %arg11[%c0_29, %c16] : memref<8x32xbf16, #tpu.memory_space<vmem>>, vector<8x8xbf16>
    %cst_30 = arith.constant dense<0.000000e+00> : vector<8x8xf32>
    %55 = tpu.matmul %53, %54, %cst_30 {dimension_numbers = #tpu.dot_dimension_numbers<[1], [1], [0], [0], [0, 0, 1, 0], [], []>} : vector<8x8xbf16>, vector<8x8xbf16>, vector<8x8xf32> -> vector<8x8xf32>
    %cst_31 = arith.constant 0.353553385 : f32
    %56 = vector.broadcast %cst_31 : f32 to vector<8x8xf32>
    %57 = arith.mulf %55, %56 : vector<8x8xf32>
    %cst_32 = arith.constant dense<0xFF800000> : vector<8xf32>
    %58 = vector.multi_reduction <maximumf>, %57, %cst_32 [1] : vector<8x8xf32> to vector<8xf32>
    %59 = vector.shape_cast %58 : vector<8xf32> to vector<8x1xf32>
    %60 = vector.broadcast %59 : vector<8x1xf32> to vector<8x8xf32>
    %61 = arith.subf %57, %60 : vector<8x8xf32>
    %62 = math.exp %61 : vector<8x8xf32>
    %cst_33 = arith.constant dense<0.000000e+00> : vector<8xf32>
    %63 = vector.multi_reduction <add>, %62, %cst_33 [1] : vector<8x8xf32> to vector<8xf32>
    %64 = vector.shape_cast %63 : vector<8xf32> to vector<8x1xf32>
    %65 = tpu.reciprocal %64 {approx = true} : vector<8x1xf32> -> vector<8x1xf32>
    %66 = vector.broadcast %65 : vector<8x1xf32> to vector<8x8xf32>
    %67 = arith.mulf %62, %66 : vector<8x8xf32>
    %68 = arith.truncf %67 : vector<8x8xf32> to vector<8x8xbf16>
    %c0_34 = arith.constant 0 : index
    %c2 = arith.constant 2 : index
    %c0_35 = arith.constant 0 : index
    %c0_36 = arith.constant 0 : index
    %69 = vector.load %arg10[%c0_34, %c2, %c0_35, %c0_36] : memref<1x4x8x8xbf16, #tpu.memory_space<vmem>>, vector<1x1x8x8xbf16>
    %70 = vector.shape_cast %69 : vector<1x1x8x8xbf16> to vector<8x8xbf16>
    %71 = vector.shape_cast %68 : vector<8x8xbf16> to vector<1x1x8x8xbf16>
    tpu.vector_store %arg10[%c0_34, %c2, %c0_35, %c0_36], %71 {strides = array<i32>} : memref<1x4x8x8xbf16, #tpu.memory_space<vmem>>, vector<1x1x8x8xbf16>,
    %c0_37 = arith.constant 0 : index
    %c16_38 = arith.constant 16 : index
    %72 = vector.load %arg12[%c0_37, %c16_38] : memref<8x32xbf16, #tpu.memory_space<vmem>>, vector<8x8xbf16>
    %73 = arith.truncf %67 : vector<8x8xf32> to vector<8x8xbf16>
    %cst_39 = arith.constant dense<0.000000e+00> : vector<8x8xf32>
    %74 = tpu.matmul %73, %72, %cst_39 {dimension_numbers = #tpu.dot_dimension_numbers<[1], [0], [0], [1], [0, 0, 1, 1], [], []>} : vector<8x8xbf16>, vector<8x8xbf16>, vector<8x8xf32> -> vector<8x8xf32>
    %75 = vector.extract_strided_slice %8 {offsets = [0, 24], sizes = [8, 8], strides = [1, 1]} : vector<8x32xbf16> to vector<8x8xbf16>
    %c0_40 = arith.constant 0 : index
    %c24 = arith.constant 24 : index
    %76 = vector.load %arg11[%c0_40, %c24] : memref<8x32xbf16, #tpu.memory_space<vmem>>, vector<8x8xbf16>
    %cst_41 = arith.constant dense<0.000000e+00> : vector<8x8xf32>
    %77 = tpu.matmul %75, %76, %cst_41 {dimension_numbers = #tpu.dot_dimension_numbers<[1], [1], [0], [0], [0, 0, 1, 0], [], []>} : vector<8x8xbf16>, vector<8x8xbf16>, vector<8x8xf32> -> vector<8x8xf32>
    %cst_42 = arith.constant 0.353553385 : f32
    %78 = vector.broadcast %cst_42 : f32 to vector<8x8xf32>
    %79 = arith.mulf %77, %78 : vector<8x8xf32>
    %cst_43 = arith.constant dense<0xFF800000> : vector<8xf32>
    %80 = vector.multi_reduction <maximumf>, %79, %cst_43 [1] : vector<8x8xf32> to vector<8xf32>
    %81 = vector.shape_cast %80 : vector<8xf32> to vector<8x1xf32>
    %82 = vector.broadcast %81 : vector<8x1xf32> to vector<8x8xf32>
    %83 = arith.subf %79, %82 : vector<8x8xf32>
    %84 = math.exp %83 : vector<8x8xf32>
    %cst_44 = arith.constant dense<0.000000e+00> : vector<8xf32>
    %85 = vector.multi_reduction <add>, %84, %cst_44 [1] : vector<8x8xf32> to vector<8xf32>
    %86 = vector.shape_cast %85 : vector<8xf32> to vector<8x1xf32>
    %87 = tpu.reciprocal %86 {approx = true} : vector<8x1xf32> -> vector<8x1xf32>
    %88 = vector.broadcast %87 : vector<8x1xf32> to vector<8x8xf32>
    %89 = arith.mulf %84, %88 : vector<8x8xf32>
    %90 = arith.truncf %89 : vector<8x8xf32> to vector<8x8xbf16>
    %c0_45 = arith.constant 0 : index
    %c3 = arith.constant 3 : index
    %c0_46 = arith.constant 0 : index
    %c0_47 = arith.constant 0 : index
    %91 = vector.load %arg10[%c0_45, %c3, %c0_46, %c0_47] : memref<1x4x8x8xbf16, #tpu.memory_space<vmem>>, vector<1x1x8x8xbf16>
    %92 = vector.shape_cast %91 : vector<1x1x8x8xbf16> to vector<8x8xbf16>
    %93 = vector.shape_cast %90 : vector<8x8xbf16> to vector<1x1x8x8xbf16>
    tpu.vector_store %arg10[%c0_45, %c3, %c0_46, %c0_47], %93 {strides = array<i32>} : memref<1x4x8x8xbf16, #tpu.memory_space<vmem>>, vector<1x1x8x8xbf16>,
    %c0_48 = arith.constant 0 : index
    %c24_49 = arith.constant 24 : index
    %94 = vector.load %arg12[%c0_48, %c24_49] : memref<8x32xbf16, #tpu.memory_space<vmem>>, vector<8x8xbf16>
    %95 = arith.truncf %89 : vector<8x8xf32> to vector<8x8xbf16>
    %cst_50 = arith.constant dense<0.000000e+00> : vector<8x8xf32>
    %96 = tpu.matmul %95, %94, %cst_50 {dimension_numbers = #tpu.dot_dimension_numbers<[1], [0], [0], [1], [0, 0, 1, 1], [], []>} : vector<8x8xbf16>, vector<8x8xbf16>, vector<8x8xf32> -> vector<8x8xf32>
    %97 = tpu.concatenate %30, %52, %74, %96 in 1 : vector<8x8xf32>, vector<8x8xf32>, vector<8x8xf32>, vector<8x8xf32> -> vector<8x32xf32>
    %98 = arith.truncf %97 : vector<8x32xf32> to vector<8x32xbf16>
    %c0_51 = arith.constant 0 : index
    %c0_52 = arith.constant 0 : index
    %99 = vector.load %arg7[%c0_51, %c0_52] : memref<32x64xbf16, #tpu.memory_space<vmem>>, vector<32x64xbf16>
    %cst_53 = arith.constant dense<0.000000e+00> : vector<8x64xf32>
    %100 = tpu.matmul %98, %99, %cst_53 {dimension_numbers = #tpu.dot_dimension_numbers<[1], [0], [0], [1], [0, 0, 1, 1], [], []>} : vector<8x32xbf16>, vector<32x64xbf16>, vector<8x64xf32> -> vector<8x64xf32>
    %cst_54 = arith.constant 0.000000e+00 : f32
    %101 = vector.broadcast %cst_54 : f32 to vector<8x64xf32>
    %102 = arith.maximumf %100, %101 : vector<8x64xf32>
    %103 = arith.truncf %102 : vector<8x64xf32> to vector<8x64xbf16>
    %c0_55 = arith.constant 0 : index
    %c0_56 = arith.constant 0 : index
    %104 = vector.load %arg8[%c0_55, %c0_56] : memref<64x32xbf16, #tpu.memory_space<vmem>>, vector<64x32xbf16>
    %cst_57 = arith.constant dense<0.000000e+00> : vector<8x32xf32>
    %105 = tpu.matmul %103, %104, %cst_57 {dimension_numbers = #tpu.dot_dimension_numbers<[1], [0], [0], [1], [0, 0, 1, 1], [], []>} : vector<8x64xbf16>, vector<64x32xbf16>, vector<8x32xf32> -> vector<8x32xf32>
    %106 = arith.addf %105, %97 : vector<8x32xf32>
    %cst_58 = arith.constant dense<0.000000e+00> : vector<8xf32>
    %107 = vector.multi_reduction <add>, %106, %cst_58 [1] : vector<8x32xf32> to vector<8xf32>
    %108 = vector.shape_cast %107 : vector<8xf32> to vector<8x1xf32>
    %cst_59 = arith.constant 3.200000e+01 : f32
    %109 = vector.broadcast %cst_59 : f32 to vector<8x1xf32>
    %110 = arith.divf %108, %109 : vector<8x1xf32>
    %111 = vector.broadcast %110 : vector<8x1xf32> to vector<8x32xf32>
    %112 = arith.subf %106, %111 : vector<8x32xf32>
    %113 = arith.mulf %112, %112 : vector<8x32xf32>
    %cst_60 = arith.constant dense<0.000000e+00> : vector<8xf32>
    %114 = vector.multi_reduction <add>, %113, %cst_60 [1] : vector<8x32xf32> to vector<8xf32>
    %115 = vector.shape_cast %114 : vector<8xf32> to vector<8x1xf32>
    %cst_61 = arith.constant 3.200000e+01 : f32
    %116 = vector.broadcast %cst_61 : f32 to vector<8x1xf32>
    %117 = arith.divf %115, %116 : vector<8x1xf32>
    %118 = vector.broadcast %110 : vector<8x1xf32> to vector<8x32xf32>
    %119 = arith.subf %106, %118 : vector<8x32xf32>
    %cst_62 = arith.constant 9.99999974E-6 : f32
    %120 = vector.broadcast %cst_62 : f32 to vector<8x1xf32>
    %121 = arith.addf %117, %120 : vector<8x1xf32>
    %122 = math.rsqrt %121 : vector<8x1xf32>
    %123 = vector.broadcast %122 : vector<8x1xf32> to vector<8x32xf32>
    %124 = arith.mulf %119, %123 : vector<8x32xf32>
    %c0_63 = arith.constant 0 : index
    %c0_64 = arith.constant 0 : index
    %c0_65 = arith.constant 0 : index
    %125 = vector.load %arg9[%c0_63, %c0_64, %c0_65] : memref<1x8x32xf32, #tpu.memory_space<vmem>>, vector<1x8x32xf32>
    %126 = vector.shape_cast %125 : vector<1x8x32xf32> to vector<8x32xf32>
    %127 = vector.shape_cast %124 : vector<8x32xf32> to vector<1x8x32xf32>
    tpu.vector_store %arg9[%c0_63, %c0_64, %c0_65], %127 {strides = array<i32>} : memref<1x8x32xf32, #tpu.memory_space<vmem>>, vector<1x8x32xf32>,
    return
  }
  func.func @transform_0(%arg0: i32, %arg1: i32) -> (i32, i32, i32) {
    %c0_i32 = arith.constant 0 : i32
    %c0_i32_0 = arith.constant 0 : i32
    return %arg0, %arg1, %c0_i32 : i32, i32, i32
  }
  func.func @transform_1(%arg0: i32, %arg1: i32) -> (i32, i32, i32) {
    %c0_i32 = arith.constant 0 : i32
    %c0_i32_0 = arith.constant 0 : i32
    %c0_i32_1 = arith.constant 0 : i32
    return %arg0, %c0_i32, %c0_i32_0 : i32, i32, i32
  }
  func.func @transform_2(%arg0: i32, %arg1: i32) -> (i32, i32) {
    %c0_i32 = arith.constant 0 : i32
    %c0_i32_0 = arith.constant 0 : i32
    %c0_i32_1 = arith.constant 0 : i32
    return %c0_i32, %c0_i32_0 : i32, i32
  }
  func.func @transform_3(%arg0: i32, %arg1: i32) -> (i32, i32) {
    %c0_i32 = arith.constant 0 : i32
    %c0_i32_0 = arith.constant 0 : i32
    %c0_i32_1 = arith.constant 0 : i32
    return %c0_i32, %c0_i32_0 : i32, i32
  }
  func.func @transform_4(%arg0: i32, %arg1: i32) -> (i32, i32) {
    %c0_i32 = arith.constant 0 : i32
    %c0_i32_0 = arith.constant 0 : i32
    %c0_i32_1 = arith.constant 0 : i32
    return %c0_i32, %c0_i32_0 : i32, i32
  }
  func.func @transform_5(%arg0: i32, %arg1: i32) -> (i32, i32) {
    %c0_i32 = arith.constant 0 : i32
    %c0_i32_0 = arith.constant 0 : i32
    %c0_i32_1 = arith.constant 0 : i32
    return %c0_i32, %c0_i32_0 : i32, i32
  }
  func.func @transform_6(%arg0: i32, %arg1: i32) -> (i32, i32) {
    %c0_i32 = arith.constant 0 : i32
    %c0_i32_0 = arith.constant 0 : i32
    %c0_i32_1 = arith.constant 0 : i32
    return %c0_i32, %c0_i32_0 : i32, i32
  }
  func.func @transform_7(%arg0: i32, %arg1: i32) -> (i32, i32, i32) {
    %c0_i32 = arith.constant 0 : i32
    %c0_i32_0 = arith.constant 0 : i32
    return %arg0, %arg1, %c0_i32 : i32, i32, i32
  }
  func.func @transform_8(%arg0: i32, %arg1: i32) -> (i32, i32, i32, i32) {
    %c0_i32 = arith.constant 0 : i32
    %c0_i32_0 = arith.constant 0 : i32
    %c0_i32_1 = arith.constant 0 : i32
    return %arg0, %c0_i32, %arg1, %c0_i32_0 : i32, i32, i32, i32
  }
}

</mosaic_0001>

<llo_original>
// kernel: tpu_custom_call.1
$region0: #{tpu_custom_call.1}
  #allocation0 [shape = 'u32[]', space=smem, size = 0x4, offset = 0x4, fixed_abs, tag = 'smem constant byte address 0x4 - core index']
  #allocation1 [shape = 'u32[144,128]{1,0:T(1,128)}', space=vmem, size = 0x12000, scoped, tag = 'internal scratch']
  #allocation2 [shape = 'bf16[8,32]{1,0:T(8,128)(2,1)}', space=vmem, size = 0x800, scoped, tag = 'scratch operand']
  #allocation3 [shape = 'bf16[8,32]{1,0:T(8,128)(2,1)}', space=vmem, size = 0x800, scoped, tag = 'scratch operand']
  %s0 = inlined_call_operand.vmem [shape: f32[2,8,32], index: 0, kind: input, shape index: {}]
  %s1 = inlined_call_operand.vmem [shape: f32[2,8,32], index: 1, kind: input, shape index: {}]
  %s2 = inlined_call_operand.vmem [shape: bf16[32,32], index: 2, kind: input, shape index: {}]
  %s3 = inlined_call_operand.hbm [shape: bf16[32,32], index: 3, kind: input, shape index: {}]
  %s4 = inlined_call_operand.hbm [shape: bf16[32,32], index: 4, kind: input, shape index: {}]
  %s5 = inlined_call_operand.hbm [shape: bf16[32,64], index: 5, kind: input, shape index: {}]
  %s6 = inlined_call_operand.vmem [shape: bf16[64,32], index: 6, kind: input, shape index: {}]
  %s7 = inlined_call_operand.hbm [shape: f32[2,8,32], index: 7, kind: output, shape index: {0}]
  %s8 = inlined_call_operand.hbm [shape: bf16[2,4,8,8], index: 8, kind: output, shape index: {1}]
  %9 = xla_tuple %s7, %s8
  %s10 = sld [smem:[#allocation0]]
  $region85: #{tpu_custom_call.1} parent=0
    _
  %s12 = ssub.s32 1, %s10
  %s13 = scalar_select 0, %s12, %s10
  $region1: #{tpu_custom_call.1} parent=0
    #allocation4 [shape = 'u8[8192]{0}', space=vmem, size = 0x2000, scoped, tag = 'input window, operand 3, single buffered']
    #allocation5 [shape = 's32[2]{0}', space=sflag, size = 0x8, scoped, tag = 'scoped memory for tpu_custom_call.1']
    #allocation6 [shape = 's32[2]{0}', space=sflag, size = 0x8, scoped, tag = 'scoped memory for tpu_custom_call.1']
    #allocation7 [shape = 'u8[8192]{0}', space=vmem, size = 0x2000, scoped, tag = 'input window, operand 4, single buffered']
    #allocation8 [shape = 's32[1]{0}', space=sflag, size = 0x4, scoped, tag = 'scoped memory for tpu_custom_call.1']
    #allocation9 [shape = 'u8[8192]{0}', space=vmem, size = 0x2000, scoped, tag = 'input window, operand 5, single buffered']
    #allocation10 [shape = 'u8[8192]{0}', space=vmem, size = 0x2000, scoped, tag = 'output window, operand 0']
    #allocation11 [shape = 'u8[16384]{0}', space=vmem, size = 0x4000, scoped, tag = 'output window, operand 1']
    #allocation12 [shape = 's32[2]{0}', space=sflag, size = 0x8, scoped, tag = 'scoped memory for tpu_custom_call.1']
    %14 = vsyncpa [#allocation5], 0
    %15 = vsyncpa [#allocation8], 0
    %16 = vsyncpa [#allocation6], 0
    %s17 = scalar_lea.sflag [#allocation6], 1
    %18 = vsyncpa %s17, 0
    %19 = vsyncpa [#allocation12], 0
    %s20 = scalar_lea.sflag [#allocation12], 1
    %21 = vsyncpa %s20, 0
    loop: start=0, step=1, limit=4
    $region2: #{tpu_custom_call.1} parent=1 // loop_pre_header
      _
    $region3: #{tpu_custom_call.1} parent=1 // loop_header
      %s23 = sphi 0, %s27
      %p24 = scmp.ge.s32.totalorder %s23, 4
      %s30 = sphi 0, %s42
      %s31 = sphi 0, %s38
      %s32 = sphi 0, %s30
      %s33 = sphi 0, %s31
      %s34 = sphi 0, %s32
      %s35 = sphi 0, %s33
      %s47 = sphi 0, %s49
      %s50 = sphi 0, %s47
      %s51 = sphi 0, %s50
      %s67 = sphi 0, %s51
      %s73 = sphi 0, %s75
      %s76 = sphi 0, %s73
      %s77 = sphi 0, %s76
      %s93 = sphi 0, %s77
      %s97 = sphi 0, %s97
      %s99 = sphi 0, %s97
      %s100 = sphi 0, %s99
      %s114 = sphi 0, %s100
      %s118 = sphi 0, %s118
      %s120 = sphi 0, %s118
      %s121 = sphi 0, %s120
      %s135 = sphi 0, %s121
      %s139 = sphi 0, %s139
      %s141 = sphi 0, %s139
      %s142 = sphi 0, %s141
      %s156 = sphi 0, %s142
      %s160 = sphi 0, %s160
      %s162 = sphi 0, %s160
      %s163 = sphi 0, %s162
      %s177 = sphi 0, %s163
      %s181 = sphi 0, %s181
      %s183 = sphi 0, %s181
      %s184 = sphi 0, %s183
      %s198 = sphi 0, %s184
      %s206 = sphi 0, %s208
      %s209 = sphi 0, %s206
      %s210 = sphi 0, %s209
      %s226 = sphi 0, %s210
      %s234 = sphi 0, %s236
      %s237 = sphi 0, %s234
      %s238 = sphi 0, %s237
      %s254 = sphi 0, %s238
    $region4: #{tpu_custom_call.1} parent=1 // loop_header_branch
      %26 = sbr.rel (%p24) target = $region8
    $region5: #{tpu_custom_call.1} parent=1 // loop_body
      %s28 = ssub.s32 %s23, 1
      %s29 = ssub.s32 %s23, 2
      %s36 = sadd.s32 1, %s31
      %p37 = scmp.ge.s32.totalorder %s36, 1
      %s38 = scalar_select %p37, 0, %s36
      %s39 = sadd.s32 1, %s30
      %s40 = scalar_select %p37, %s39, %s30
      %p41 = scmp.ge.s32.totalorder %s40, 2
      %s42 = scalar_select %p41, 0, %s40
      %s43 = ssub.s32 %s30, %s42
      %s44 = ssub.s32 %s31, %s38
      %s45 = sor.u32 %s43, %s44
      %p46 = scmp.eq.s32.totalorder %s45, 0
      %s48 = sadd.s32 %s47, 1
      %s49 = scalar_select %p46, %s47, %s48
      %p52 = pneg %p46
      %p53 = scmp.eq.s32.totalorder %s23, 1
      %p54 = por %p52, %p53
      %p55 = scmp.ne.s32.totalorder %s47, %s50
      %p56 = scmp.eq.s32.totalorder %s23, 0
      %p57 = por %p55, %p56
      %p58 = scmp.ne.s32.totalorder %s47, %s50
      %p59 = scmp.eq.s32.totalorder %s28, 1
      %p60 = por %p58, %p59
      %p61 = scmp.ne.s32.totalorder %s50, %s51
      %p62 = scmp.eq.s32.totalorder %s28, 0
      %p63 = por %p61, %p62
      %p64 = scmp.ne.s32.totalorder %s50, %s51
      %p65 = scmp.eq.s32.totalorder %s29, 1
      %p66 = por %p64, %p65
      %p68 = scmp.ne.s32.totalorder %s51, %s67
      %p69 = scmp.eq.s32.totalorder %s29, 0
      %p70 = por %p68, %p69
      %s71 = ssub.s32 %s30, %s42
      %p72 = scmp.eq.s32.totalorder %s71, 0
      %s74 = sadd.s32 %s73, 1
      %s75 = scalar_select %p72, %s73, %s74
      %p78 = pneg %p72
      %p79 = scmp.eq.s32.totalorder %s23, 1
      %p80 = por %p78, %p79
      %p81 = scmp.ne.s32.totalorder %s73, %s76
      %p82 = scmp.eq.s32.totalorder %s23, 0
      %p83 = por %p81, %p82
      %p84 = scmp.ne.s32.totalorder %s73, %s76
      %p85 = scmp.eq.s32.totalorder %s28, 1
      %p86 = por %p84, %p85
      %p87 = scmp.ne.s32.totalorder %s76, %s77
      %p88 = scmp.eq.s32.totalorder %s28, 0
      %p89 = por %p87, %p88
      %p90 = scmp.ne.s32.totalorder %s76, %s77
      %p91 = scmp.eq.s32.totalorder %s29, 1
      %p92 = por %p90, %p91
      %p94 = scmp.ne.s32.totalorder %s77, %s93
      %p95 = scmp.eq.s32.totalorder %s29, 0
      %p96 = por %p94, %p95
      %s98 = sadd.s32 %s97, 1
      %p101 = scmp.eq.s32.totalorder %s23, 1
      %p102 = scmp.ne.s32.totalorder %s97, %s99
      %p103 = scmp.eq.s32.totalorder %s23, 0
      %p104 = por %p102, %p103
      %p105 = scmp.ne.s32.totalorder %s97, %s99
      %p106 = scmp.eq.s32.totalorder %s28, 1
      %p107 = por %p105, %p106
      %p108 = scmp.ne.s32.totalorder %s99, %s100
      %p109 = scmp.eq.s32.totalorder %s28, 0
      %p110 = por %p108, %p109
      %p111 = scmp.ne.s32.totalorder %s99, %s100
      %p112 = scmp.eq.s32.totalorder %s29, 1
      %p113 = por %p111, %p112
      %p115 = scmp.ne.s32.totalorder %s100, %s114
      %p116 = scmp.eq.s32.totalorder %s29, 0
      %p117 = por %p115, %p116
      %s119 = sadd.s32 %s118, 1
      %p122 = scmp.eq.s32.totalorder %s23, 1
      %p123 = scmp.ne.s32.totalorder %s118, %s120
      %p124 = scmp.eq.s32.totalorder %s23, 0
      %p125 = por %p123, %p124
      %p126 = scmp.ne.s32.totalorder %s118, %s120
      %p127 = scmp.eq.s32.totalorder %s28, 1
      %p128 = por %p126, %p127
      %p129 = scmp.ne.s32.totalorder %s120, %s121
      %p130 = scmp.eq.s32.totalorder %s28, 0
      %p131 = por %p129, %p130
      %p132 = scmp.ne.s32.totalorder %s120, %s121
      %p133 = scmp.eq.s32.totalorder %s29, 1
      %p134 = por %p132, %p133
      %p136 = scmp.ne.s32.totalorder %s121, %s135
      %p137 = scmp.eq.s32.totalorder %s29, 0
      %p138 = por %p136, %p137
      %s140 = sadd.s32 %s139, 1
      %p143 = scmp.eq.s32.totalorder %s23, 1
      %p144 = scmp.ne.s32.totalorder %s139, %s141
      %p145 = scmp.eq.s32.totalorder %s23, 0
      %p146 = por %p144, %p145
      %p147 = scmp.ne.s32.totalorder %s139, %s141
      %p148 = scmp.eq.s32.totalorder %s28, 1
      %p149 = por %p147, %p148
      %p150 = scmp.ne.s32.totalorder %s141, %s142
      %p151 = scmp.eq.s32.totalorder %s28, 0
      %p152 = por %p150, %p151
      %p153 = scmp.ne.s32.totalorder %s141, %s142
      %p154 = scmp.eq.s32.totalorder %s29, 1
      %p155 = por %p153, %p154
      %p157 = scmp.ne.s32.totalorder %s142, %s156
      %p158 = scmp.eq.s32.totalorder %s29, 0
      %p159 = por %p157, %p158
      %s161 = sadd.s32 %s160, 1
      %p164 = scmp.eq.s32.totalorder %s23, 1
      %p165 = scmp.ne.s32.totalorder %s160, %s162
      %p166 = scmp.eq.s32.totalorder %s23, 0
      %p167 = por %p165, %p166
      %p168 = scmp.ne.s32.totalorder %s160, %s162
      %p169 = scmp.eq.s32.totalorder %s28, 1
      %p170 = por %p168, %p169
      %p171 = scmp.ne.s32.totalorder %s162, %s163
      %p172 = scmp.eq.s32.totalorder %s28, 0
      %p173 = por %p171, %p172
      %p174 = scmp.ne.s32.totalorder %s162, %s163
      %p175 = scmp.eq.s32.totalorder %s29, 1
      %p176 = por %p174, %p175
      %p178 = scmp.ne.s32.totalorder %s163, %s177
      %p179 = scmp.eq.s32.totalorder %s29, 0
      %p180 = por %p178, %p179
      %s182 = sadd.s32 %s181, 1
      %p185 = scmp.eq.s32.totalorder %s23, 1
      %p186 = scmp.ne.s32.totalorder %s181, %s183
      %p187 = scmp.eq.s32.totalorder %s23, 0
      %p188 = por %p186, %p187
      %p189 = scmp.ne.s32.totalorder %s181, %s183
      %p190 = scmp.eq.s32.totalorder %s28, 1
      %p191 = por %p189, %p190
      %p192 = scmp.ne.s32.totalorder %s183, %s184
      %p193 = scmp.eq.s32.totalorder %s28, 0
      %p194 = por %p192, %p193
      %p195 = scmp.ne.s32.totalorder %s183, %s184
      %p196 = scmp.eq.s32.totalorder %s29, 1
      %p197 = por %p195, %p196
      %p199 = scmp.ne.s32.totalorder %s184, %s198
      %p200 = scmp.eq.s32.totalorder %s29, 0
      %p201 = por %p199, %p200
      %s202 = ssub.s32 %s30, %s42
      %s203 = ssub.s32 %s31, %s38
      %s204 = sor.u32 %s202, %s203
      %p205 = scmp.eq.s32.totalorder %s204, 0
      %s207 = sadd.s32 %s206, 1
      %s208 = scalar_select %p205, %s206, %s207
      %p211 = pneg %p205
      %p212 = scmp.eq.s32.totalorder %s23, 1
      %p213 = por %p211, %p212
      %p214 = scmp.ne.s32.totalorder %s206, %s209
      %p215 = scmp.eq.s32.totalorder %s23, 0
      %p216 = por %p214, %p215
      %p217 = scmp.ne.s32.totalorder %s206, %s209
      %p218 = scmp.eq.s32.totalorder %s28, 1
      %p219 = por %p217, %p218
      %p220 = scmp.ne.s32.totalorder %s209, %s210
      %p221 = scmp.eq.s32.totalorder %s28, 0
      %p222 = por %p220, %p221
      %p223 = scmp.ne.s32.totalorder %s209, %s210
      %p224 = scmp.eq.s32.totalorder %s29, 1
      %p225 = por %p223, %p224
      %p227 = scmp.ne.s32.totalorder %s210, %s226
      %p228 = scmp.eq.s32.totalorder %s29, 0
      %p229 = por %p227, %p228
      %s230 = ssub.s32 %s30, %s42
      %s231 = ssub.s32 %s31, %s38
      %s232 = sor.u32 %s230, %s231
      %p233 = scmp.eq.s32.totalorder %s232, 0
      %s235 = sadd.s32 %s234, 1
      %s236 = scalar_select %p233, %s234, %s235
      %p239 = pneg %p233
      %p240 = scmp.eq.s32.totalorder %s23, 1
      %p241 = por %p239, %p240
      %p242 = scmp.ne.s32.totalorder %s234, %s237
      %p243 = scmp.eq.s32.totalorder %s23, 0
      %p244 = por %p242, %p243
      %p245 = scmp.ne.s32.totalorder %s234, %s237
      %p246 = scmp.eq.s32.totalorder %s28, 1
      %p247 = por %p245, %p246
      %p248 = scmp.ne.s32.totalorder %s237, %s238
      %p249 = scmp.eq.s32.totalorder %s28, 0
      %p250 = por %p248, %p249
      %p251 = scmp.ne.s32.totalorder %s237, %s238
      %p252 = scmp.eq.s32.totalorder %s29, 1
      %p253 = por %p251, %p252
      %p255 = scmp.ne.s32.totalorder %s238, %s254
      %p256 = scmp.eq.s32.totalorder %s29, 0
      %p257 = por %p255, %p256
      %p258 = scmp.le.s32.totalorder 1, %s23
      %p259 = scmp.lt.s32.totalorder %s23, 3
      %p260 = pnand %p258, %p259
      %p261 = pneg %p260
      // Predicated region
      $region9: #{tpu_custom_call.1} parent=5 // pred_check
        _
      $region10: #{tpu_custom_call.1} parent=5 // pred_check_branch
        %263 = sbr.rel (%p260) target = $region12
      $region11: #{tpu_custom_call.1} parent=5 // pred_region
        %s264 = ssub.s32 %s23, 1
        // Predicated region
        $region13: #{tpu_custom_call.1} parent=11 // pred_check
          %p265 = pneg %p89
        $region14: #{tpu_custom_call.1} parent=11 // pred_check_branch
          %267 = sbr.rel (%p265) target = $region16
        $region15: #{tpu_custom_call.1} parent=11 // pred_region
          %p268 = scmp.lt.s32.totalorder %s32, 1
          %s269 = scalar_select %p268, %s32, 1
          %s270 = smul.addr %s269, 8
          %s271 = scalar_lea.vmem %s1, %s270
        $region16: #{tpu_custom_call.1} parent=11 // pred_fallthru
          _
        // Predicated region
        $region17: #{tpu_custom_call.1} parent=11 // pred_check
          %p272 = pneg %p110
        $region18: #{tpu_custom_call.1} parent=11 // pred_check_branch
          %274 = sbr.rel (%p272) target = $region20
        $region19: #{tpu_custom_call.1} parent=11 // pred_region
          _
        $region20: #{tpu_custom_call.1} parent=11 // pred_fallthru
          _
        // Predicated region
        $region21: #{tpu_custom_call.1} parent=11 // pred_check
          %p275 = pneg %p131
        $region22: #{tpu_custom_call.1} parent=11 // pred_check_branch
          %277 = sbr.rel (%p275) target = $region24
        $region23: #{tpu_custom_call.1} parent=11 // pred_region
          %s279 = ssub.s32 256, 256
          %280 = vsyncadd [#allocation5], %s279
          %s281 = sshll.u32 [#allocation4], 4
          %s282 = int_to_ptr.vmem [resolvable:$true] %s281
          %287 = dma.hbm_to_vmem [thread:$0]  %s3, 256, %s282, [#allocation5], 64, 64, 4
        $region24: #{tpu_custom_call.1} parent=11 // pred_fallthru
          _
        // Predicated region
        $region25: #{tpu_custom_call.1} parent=11 // pred_check
          %p288 = pneg %p152
        $region26: #{tpu_custom_call.1} parent=11 // pred_check_branch
          %290 = sbr.rel (%p288) target = $region28
        $region27: #{tpu_custom_call.1} parent=11 // pred_region
          %s292 = ssub.s32 256, 256
          %293 = vsyncadd [#allocation8], %s292
          %s294 = sshll.u32 [#allocation7], 4
          %s295 = int_to_ptr.vmem [resolvable:$true] %s294
          %300 = dma.hbm_to_vmem [thread:$0]  %s4, 256, %s295, [#allocation8], 64, 64, 4
        $region28: #{tpu_custom_call.1} parent=11 // pred_fallthru
          _
        // Predicated region
        $region29: #{tpu_custom_call.1} parent=11 // pred_check
          %p301 = pneg %p173
        $region30: #{tpu_custom_call.1} parent=11 // pred_check_branch
          %303 = sbr.rel (%p301) target = $region32
        $region31: #{tpu_custom_call.1} parent=11 // pred_region
          %s305 = ssub.s32 256, 256
          %306 = vsyncadd [#allocation8], %s305
          %s307 = sshll.u32 [#allocation9], 4
          %s308 = int_to_ptr.vmem [resolvable:$true] %s307
          %313 = dma.hbm_to_vmem [thread:$0]  %s5, 256, %s308, [#allocation8], 64, 64, 4
        $region32: #{tpu_custom_call.1} parent=11 // pred_fallthru
          _
        // Predicated region
        $region33: #{tpu_custom_call.1} parent=11 // pred_check
          %p314 = pneg %p194
        $region34: #{tpu_custom_call.1} parent=11 // pred_check_branch
          %316 = sbr.rel (%p314) target = $region36
        $region35: #{tpu_custom_call.1} parent=11 // pred_region
          _
        $region36: #{tpu_custom_call.1} parent=11 // pred_fallthru
          _
      $region12: #{tpu_custom_call.1} parent=5 // pred_fallthru
        _
      %p317 = scmp.lt.s32.totalorder %s23, 2
      // Predicated region
      $region37: #{tpu_custom_call.1} parent=5 // pred_check
        %p318 = pneg %p317
      $region38: #{tpu_custom_call.1} parent=5 // pred_check_branch
        %320 = sbr.rel (%p318) target = $region40
      $region39: #{tpu_custom_call.1} parent=5 // pred_region
        // Predicated region
        $region41: #{tpu_custom_call.1} parent=39 // pred_check
          %p321 = pneg %p57
        $region42: #{tpu_custom_call.1} parent=39 // pred_check_branch
          %323 = sbr.rel (%p321) target = $region44
        $region43: #{tpu_custom_call.1} parent=39 // pred_region
          %p324 = scmp.lt.s32.totalorder %s30, 1
          %s325 = scalar_select %p324, %s30, 1
          %p326 = scmp.lt.s32.totalorder %s31, 0
          %s327 = scalar_select %p326, %s31, 0
          %s328 = sadd.s32 %s327, %s325
          %s329 = smul.addr %s328, 8
          %s330 = scalar_lea.vmem %s0, %s329
        $region44: #{tpu_custom_call.1} parent=39 // pred_fallthru
          _
      $region40: #{tpu_custom_call.1} parent=5 // pred_fallthru
        _
      %p331 = scmp.le.s32.totalorder 1, %s23
      %p332 = scmp.lt.s32.totalorder %s23, 3
      %p333 = pnand %p331, %p332
      %p334 = pneg %p333
      // Predicated region
      $region45: #{tpu_custom_call.1} parent=5 // pred_check
        _
      $region46: #{tpu_custom_call.1} parent=5 // pred_check_branch
        %336 = sbr.rel (%p333) target = $region48
      $region47: #{tpu_custom_call.1} parent=5 // pred_region
        %s337 = ssub.s32 %s23, 1
        // Predicated region
        $region49: #{tpu_custom_call.1} parent=47 // pred_check
          %p338 = pneg %p131
        $region50: #{tpu_custom_call.1} parent=47 // pred_check_branch
          %340 = sbr.rel (%p338) target = $region52
        $region51: #{tpu_custom_call.1} parent=47 // pred_region
          %341 = dma.done [#allocation5], 256
        $region52: #{tpu_custom_call.1} parent=47 // pred_fallthru
          _
        // Predicated region
        $region53: #{tpu_custom_call.1} parent=47 // pred_check
          %p342 = pneg %p152
        $region54: #{tpu_custom_call.1} parent=47 // pred_check_branch
          %344 = sbr.rel (%p342) target = $region56
        $region55: #{tpu_custom_call.1} parent=47 // pred_region
          %345 = dma.done [#allocation8], 256
        $region56: #{tpu_custom_call.1} parent=47 // pred_fallthru
          _
        // Predicated region
        $region57: #{tpu_custom_call.1} parent=47 // pred_check
          %p346 = pneg %p173
        $region58: #{tpu_custom_call.1} parent=47 // pred_check_branch
          %348 = sbr.rel (%p346) target = $region60
        $region59: #{tpu_custom_call.1} parent=47 // pred_region
          %349 = dma.done [#allocation8], 256
        $region60: #{tpu_custom_call.1} parent=47 // pred_fallthru
          _
        %p350 = scmp.lt.s32.totalorder %s32, 1
        %s351 = scalar_select %p350, %s32, 1
        %p352 = scmp.lt.s32.totalorder %s33, 0
        %s353 = scalar_select %p352, %s33, 0
        %s354 = sadd.s32 %s353, %s351
        %s355 = smul.addr %s354, 8
        %s356 = scalar_lea.vmem %s0, %s355
        %p357 = pneg %p63
        %p358 = pneg %p60
        %p359 = scmp.lt.s32.totalorder %s32, 1
        %s360 = scalar_select %p359, %s32, 1
        %s361 = smul.addr %s360, 8
        %s362 = scalar_lea.vmem %s1, %s361
        %p363 = pneg %p89
        %p364 = pneg %p86
        %p365 = pneg %p110
        %p366 = pneg %p107
        %p367 = pneg %p131
        %p368 = pneg %p128
        %p369 = pneg %p152
        %p370 = pneg %p149
        %p371 = pneg %p173
        %p372 = pneg %p170
        %p373 = pneg %p194
        %p374 = pneg %p191
        %p375 = pneg %p222
        %p376 = pneg %p219
        %s377 = sand.u32 %s209, 1
        %s378 = scalar_lea.sflag [#allocation6], %s377
        %s379 = sand.u32 %s209, 1
        %s380 = smul.addr %s379, 8
        %s381 = scalar_lea.vmem [#allocation10], %s380
        %p382 = pneg %p250
        %p383 = pneg %p247
        %s384 = sand.u32 %s237, 1
        %s385 = scalar_lea.sflag [#allocation12], %s384
        %s386 = sand.u32 %s237, 1
        %s387 = smul.addr %s386, 16
        %s388 = scalar_lea.vmem [#allocation11], %s387
        %p389 = scmp.lt.s32.totalorder %s32, 1
        %s390 = scalar_select %p389, %s32, 1
        %p391 = scmp.lt.s32.totalorder %s33, 0
        %s392 = scalar_select %p391, %s33, 0
        %s393 = sadd.s32 %s392, %s390
        %s394 = smul.addr %s393, 8
        %s395 = scalar_lea.vmem %s0, %s394
        %p396 = scmp.lt.s32.totalorder %s32, 1
        %s397 = scalar_select %p396, %s32, 1
        %s398 = smul.addr %s397, 8
        %s399 = scalar_lea.vmem %s1, %s398
        %p401 = scmp.eq.s32.totalorder %s33, 0
        // Predicated region
        $region61: #{tpu_custom_call.1} parent=47 // pred_check
          %p402 = pneg %p401
        $region62: #{tpu_custom_call.1} parent=47 // pred_check_branch
          %404 = sbr.rel (%p402) target = $region64
        $region63: #{tpu_custom_call.1} parent=47 // pred_region
          %v405 = vld [vmem:[%s399] sm:$0xff]
          %v406 = vpack.c.bf16 %v405, %v405
          %v407 = vld [vmem:[#allocation4] sm:$0xf]
          %v408 = vld [vmem:[#allocation4 + $0x4] sm:$0xf]
          %v409 = vld [vmem:[#allocation4 + $0x8] sm:$0xf]
          %v410 = vld [vmem:[#allocation4 + $0xc] sm:$0xf]
          %v415 = vunpack.c.l.b16 %v407
          %v416 = vunpack.c.l.b16 %v408
          %v417 = vunpack.c.l.b16 %v409
          %v418 = vunpack.c.l.b16 %v410
          %v419 = vpack.c.b16 %v416, %v415
          %v420 = vpack.c.b16 %v418, %v417
          %vm423 = vcmask 261120
          %v425 = vsel %vm423, %v406, 0
          %427 = vmatprep.subr.bf16.mxu0 0
          %428 = vmatpush1.bf16.msra.mxu0 %v419
          %429 = vmatprep.subr.bf16.mxu0 0
          %430 = vmatpush1.bf16.msra.mxu0 %v420
          %431 = vmatprep.subr.bf16.mxu0 0
          %432 = vmatpush1.bf16.msra.mxu0 0
          %433 = vmatprep.subr.bf16.mxu0 0
          %434 = vmatpush1.bf16.msra.mxu0 0
          %435 = vmatprep.subr.bf16.mxu0 0
          %436 = vmatpush1.bf16.msra.mxu0 0
          %437 = vmatprep.subr.bf16.mxu0 0
          %438 = vmatpush1.bf16.msra.mxu0 0
          %439 = vmatprep.subr.bf16.mxu0 0
          %440 = vmatpush1.bf16.msra.mxu0 0
          %441 = vmatprep.subr.bf16.mxu0 0
          %442 = vmatpush1.bf16.msra.mxu0 0
          %443 = vmatprep.subr.bf16.mxu0 0
          %444 = vmatpush1.bf16.msra.mxu0 0
          %445 = vmatprep.subr.bf16.mxu0 0
          %446 = vmatpush1.bf16.msra.mxu0 0
          %447 = vmatprep.subr.bf16.mxu0 0
          %448 = vmatpush1.bf16.msra.mxu0 0
          %449 = vmatprep.subr.bf16.mxu0 0
          %450 = vmatpush1.bf16.msra.mxu0 0
          %451 = vmatprep.subr.bf16.mxu0 0
          %452 = vmatpush1.bf16.msra.mxu0 0
          %453 = vmatprep.subr.bf16.mxu0 0
          %454 = vmatpush1.bf16.msra.mxu0 0
          %455 = vmatprep.subr.bf16.mxu0 0
          %456 = vmatpush1.bf16.msra.mxu0 0
          %457 = vmatprep.subr.bf16.mxu0 0
          %458 = vmatpush1.bf16.msra.mxu0 0
          %459 = vmatprep.mubr.bf16.mxu0 0
          %460 = vmatmul.mubr.bf16.gmra.mrb[0].mxu0 %v425
          %v461 = vpop.f32.mrb[0].mxu0
          %v462 = vadd.f32 0.0, %v461
          %v463 = vpop.f32.mrb[0].mxu0
          %v464 = vpop.f32.mrb[0].mxu0
          %v465 = vpop.f32.mrb[0].mxu0
          %466 = vdwg.mxu0
          %v467 = vpack.c.bf16 %v462, %v462
          %vm468 = vcmask 257024
          %469 = vst.msk [vmem:[#allocation2] sm:$0xf] %vm468, %v467
          %v470 = vld [vmem:[#allocation7] sm:$0xf]
          %v471 = vld [vmem:[#allocation7 + $0x4] sm:$0xf]
          %v472 = vld [vmem:[#allocation7 + $0x8] sm:$0xf]
          %v473 = vld [vmem:[#allocation7 + $0xc] sm:$0xf]
          %v478 = vunpack.c.l.b16 %v470
          %v479 = vunpack.c.l.b16 %v471
          %v480 = vunpack.c.l.b16 %v472
          %v481 = vunpack.c.l.b16 %v473
          %v482 = vpack.c.b16 %v479, %v478
          %v483 = vpack.c.b16 %v481, %v480
          %486 = vmatprep.subr.bf16.mxu0 0
          %487 = vmatpush1.bf16.msra.mxu0 %v482
          %488 = vmatprep.subr.bf16.mxu0 0
          %489 = vmatpush1.bf16.msra.mxu0 %v483
          %490 = vmatprep.subr.bf16.mxu0 0
          %491 = vmatpush1.bf16.msra.mxu0 0
          %492 = vmatprep.subr.bf16.mxu0 0
          %493 = vmatpush1.bf16.msra.mxu0 0
          %494 = vmatprep.subr.bf16.mxu0 0
          %495 = vmatpush1.bf16.msra.mxu0 0
          %496 = vmatprep.subr.bf16.mxu0 0
          %497 = vmatpush1.bf16.msra.mxu0 0
          %498 = vmatprep.subr.bf16.mxu0 0
          %499 = vmatpush1.bf16.msra.mxu0 0
          %500 = vmatprep.subr.bf16.mxu0 0
          %501 = vmatpush1.bf16.msra.mxu0 0
          %502 = vmatprep.subr.bf16.mxu0 0
          %503 = vmatpush1.bf16.msra.mxu0 0
          %504 = vmatprep.subr.bf16.mxu0 0
          %505 = vmatpush1.bf16.msra.mxu0 0
          %506 = vmatprep.subr.bf16.mxu0 0
          %507 = vmatpush1.bf16.msra.mxu0 0
          %508 = vmatprep.subr.bf16.mxu0 0
          %509 = vmatpush1.bf16.msra.mxu0 0
          %510 = vmatprep.subr.bf16.mxu0 0
          %511 = vmatpush1.bf16.msra.mxu0 0
          %512 = vmatprep.subr.bf16.mxu0 0
          %513 = vmatpush1.bf16.msra.mxu0 0
          %514 = vmatprep.subr.bf16.mxu0 0
          %515 = vmatpush1.bf16.msra.mxu0 0
          %516 = vmatprep.subr.bf16.mxu0 0
          %517 = vmatpush1.bf16.msra.mxu0 0
          %518 = vmatprep.mubr.bf16.mxu0 0
          %519 = vmatmul.mubr.bf16.gmra.mrb[0].mxu0 %v425
          %v520 = vpop.f32.mrb[0].mxu0
          %v521 = vadd.f32 0.0, %v520
          %v522 = vpop.f32.mrb[0].mxu0
          %v523 = vpop.f32.mrb[0].mxu0
          %v524 = vpop.f32.mrb[0].mxu0
          %525 = vdwg.mxu0
          %v526 = vpack.c.bf16 %v521, %v521
          %527 = vst.msk [vmem:[#allocation3] sm:$0xf] %vm468, %v526
        $region64: #{tpu_custom_call.1} parent=47 // pred_fallthru
          _
        %v528 = vld [vmem:[%s395] sm:$0xff]
        %v529 = vpack.c.bf16 %v528, %v528
        %v530 = vld [vmem:[%s2] sm:$0xf]
        %v531 = vld [vmem:[%s2 + $0x4] sm:$0xf]
        %v532 = vld [vmem:[%s2 + $0x8] sm:$0xf]
        %v533 = vld [vmem:[%s2 + $0xc] sm:$0xf]
        %v538 = vunpack.c.l.b16 %v530
        %v539 = vunpack.c.l.b16 %v531
        %v540 = vunpack.c.l.b16 %v532
        %v541 = vunpack.c.l.b16 %v533
        %v542 = vpack.c.b16 %v539, %v538
        %v543 = vpack.c.b16 %v541, %v540
        %vm546 = vcmask 261120
        %v548 = vsel %vm546, %v529, 0
        %550 = vmatprep.subr.bf16.mxu0 0
        %551 = vmatpush1.bf16.msra.mxu0 %v542
        %552 = vmatprep.subr.bf16.mxu0 0
        %553 = vmatpush1.bf16.msra.mxu0 %v543
        %554 = vmatprep.subr.bf16.mxu0 0
        %555 = vmatpush1.bf16.msra.mxu0 0
        %556 = vmatprep.subr.bf16.mxu0 0
        %557 = vmatpush1.bf16.msra.mxu0 0
        %558 = vmatprep.subr.bf16.mxu0 0
        %559 = vmatpush1.bf16.msra.mxu0 0
        %560 = vmatprep.subr.bf16.mxu0 0
        %561 = vmatpush1.bf16.msra.mxu0 0
        %562 = vmatprep.subr.bf16.mxu0 0
        %563 = vmatpush1.bf16.msra.mxu0 0
        %564 = vmatprep.subr.bf16.mxu0 0
        %565 = vmatpush1.bf16.msra.mxu0 0
        %566 = vmatprep.subr.bf16.mxu0 0
        %567 = vmatpush1.bf16.msra.mxu0 0
        %568 = vmatprep.subr.bf16.mxu0 0
        %569 = vmatpush1.bf16.msra.mxu0 0
        %570 = vmatprep.subr.bf16.mxu0 0
        %571 = vmatpush1.bf16.msra.mxu0 0
        %572 = vmatprep.subr.bf16.mxu0 0
        %573 = vmatpush1.bf16.msra.mxu0 0
        %574 = vmatprep.subr.bf16.mxu0 0
        %575 = vmatpush1.bf16.msra.mxu0 0
        %576 = vmatprep.subr.bf16.mxu0 0
        %577 = vmatpush1.bf16.msra.mxu0 0
        %578 = vmatprep.subr.bf16.mxu0 0
        %579 = vmatpush1.bf16.msra.mxu0 0
        %580 = vmatprep.subr.bf16.mxu0 0
        %581 = vmatpush1.bf16.msra.mxu0 0
        %582 = vmatprep.mubr.bf16.mxu0 0
        %583 = vmatmul.mubr.bf16.gmra.mrb[0].mxu0 %v548
        %v584 = vpop.f32.mrb[0].mxu0
        %v585 = vadd.f32 0.0, %v584
        %v586 = vpop.f32.mrb[0].mxu0
        %v587 = vpop.f32.mrb[0].mxu0
        %v588 = vpop.f32.mrb[0].mxu0
        %589 = vdwg.mxu0
        %v590 = vpack.c.bf16 %v585, %v585
        %v591 = vld [vmem:[#allocation2] sm:$0xf]
        %vm592 = vcmask 64512
        %v594 = vsel %vm592, %v590, 0
        %v597 = vsel %vm592, %v591, 0
        %599 = vmatprep.subr.bf16.mxu0 0
        %600 = vmatpush1.bf16.xpose.msra.mxu0 %v597
        %601 = vmatprep.subr.bf16.mxu0 0
        %602 = vmatpush1.bf16.xpose.msra.mxu0 0
        %603 = vmatprep.subr.bf16.mxu0 0
        %604 = vmatpush1.bf16.xpose.msra.mxu0 0
        %605 = vmatprep.subr.bf16.mxu0 0
        %606 = vmatpush1.bf16.xpose.msra.mxu0 0
        %607 = vmatprep.subr.bf16.mxu0 0
        %608 = vmatpush1.bf16.xpose.msra.mxu0 0
        %609 = vmatprep.subr.bf16.mxu0 0
        %610 = vmatpush1.bf16.xpose.msra.mxu0 0
        %611 = vmatprep.subr.bf16.mxu0 0
        %612 = vmatpush1.bf16.xpose.msra.mxu0 0
        %613 = vmatprep.subr.bf16.mxu0 0
        %614 = vmatpush1.bf16.xpose.msra.mxu0 0
        %615 = vmatprep.subr.bf16.mxu0 0
        %616 = vmatpush1.bf16.xpose.msra.mxu0 0
        %617 = vmatprep.subr.bf16.mxu0 0
        %618 = vmatpush1.bf16.xpose.msra.mxu0 0
        %619 = vmatprep.subr.bf16.mxu0 0
        %620 = vmatpush1.bf16.xpose.msra.mxu0 0
        %621 = vmatprep.subr.bf16.mxu0 0
        %622 = vmatpush1.bf16.xpose.msra.mxu0 0
        %623 = vmatprep.subr.bf16.mxu0 0
        %624 = vmatpush1.bf16.xpose.msra.mxu0 0
        %625 = vmatprep.subr.bf16.mxu0 0
        %626 = vmatpush1.bf16.xpose.msra.mxu0 0
        %627 = vmatprep.subr.bf16.mxu0 0
        %628 = vmatpush1.bf16.xpose.msra.mxu0 0
        %629 = vmatprep.subr.bf16.mxu0 0
        %630 = vmatpush1.bf16.xpose.msra.mxu0 0
        %631 = vmatprep.mubr.bf16.mxu0 0
        %632 = vmatmul.mubr.bf16.gmra.mrb[0].mxu0 %v594
        %v633 = vpop.f32.mrb[0].mxu0
        %v634 = vadd.f32 0.0, %v633
        %v635 = vpop.f32.mrb[0].mxu0
        %v636 = vpop.f32.mrb[0].mxu0
        %v637 = vpop.f32.mrb[0].mxu0
        %638 = vdwg.mxu0
        %v639 = vmul.f32 %v634, 0.35355338
        %v640 = vsel %vm592, %v639, -inf
        %641 = vmax.xlane.f32.xlu0 %v640
        %v642 = vpop.xlane.xlu0 %641
        %v643 = vsub.f32 %v639, %v642
        %v644 = vmul.f32 %v643, 1.442695
        %v645 = vpow.pop %v644
        %v646 = vsel %vm592, %v645, 0.0
        %647 = vadd.xlane.f32.xlu0 %v646
        %v648 = vpop.xlane.xlu0 %647
        %v649 = vrcp.pop %v648
        %v650 = vmul.f32 %v645, %v649
        %v651 = vpack.c.bf16 %v650, %v650
        %vm652 = vcmask 60416
        %653 = vst.msk [vmem:[%s388] sm:$0xf] %vm652, %v651
        %v654 = vld [vmem:[#allocation3] sm:$0xf]
        %v656 = vsel %vm592, %v651, 0
        %vm658 = vcmask 1043456
        %v660 = vsel %vm658, %v654, 0
        %662 = vmatprep.subr.bf16.mxu0 0
        %663 = vmatpush1.bf16.msra.mxu0 %v660
        %664 = vmatprep.subr.bf16.mxu0 0
        %665 = vmatpush1.bf16.msra.mxu0 0
        %666 = vmatprep.subr.bf16.mxu0 0
        %667 = vmatpush1.bf16.msra.mxu0 0
        %668 = vmatprep.subr.bf16.mxu0 0
        %669 = vmatpush1.bf16.msra.mxu0 0
        %670 = vmatprep.subr.bf16.mxu0 0
        %671 = vmatpush1.bf16.msra.mxu0 0
        %672 = vmatprep.subr.bf16.mxu0 0
        %673 = vmatpush1.bf16.msra.mxu0 0
        %674 = vmatprep.subr.bf16.mxu0 0
        %675 = vmatpush1.bf16.msra.mxu0 0
        %676 = vmatprep.subr.bf16.mxu0 0
        %677 = vmatpush1.bf16.msra.mxu0 0
        %678 = vmatprep.subr.bf16.mxu0 0
        %679 = vmatpush1.bf16.msra.mxu0 0
        %680 = vmatprep.subr.bf16.mxu0 0
        %681 = vmatpush1.bf16.msra.mxu0 0
        %682 = vmatprep.subr.bf16.mxu0 0
        %683 = vmatpush1.bf16.msra.mxu0 0
        %684 = vmatprep.subr.bf16.mxu0 0
        %685 = vmatpush1.bf16.msra.mxu0 0
        %686 = vmatprep.subr.bf16.mxu0 0
        %687 = vmatpush1.bf16.msra.mxu0 0
        %688 = vmatprep.subr.bf16.mxu0 0
        %689 = vmatpush1.bf16.msra.mxu0 0
        %690 = vmatprep.subr.bf16.mxu0 0
        %691 = vmatpush1.bf16.msra.mxu0 0
        %692 = vmatprep.subr.bf16.mxu0 0
        %693 = vmatpush1.bf16.msra.mxu0 0
        %694 = vmatprep.mubr.bf16.mxu0 0
        %695 = vmatmul.mubr.bf16.gmra.mrb[0].mxu0 %v656
        %v696 = vpop.f32.mrb[0].mxu0
        %v697 = vadd.f32 0.0, %v696
        %v698 = vpop.f32.mrb[0].mxu0
        %v699 = vpop.f32.mrb[0].mxu0
        %v700 = vpop.f32.mrb[0].mxu0
        %701 = vdwg.mxu0
        %v702 = vld [vmem:[#allocation2] sm:$0xf]
        %704 = vrot.lane.b32.xlu0 %v590, 120
        %v705 = vpop.permute.xlu0 %704
        %v707 = vunpack.c.l.b16 %v702
        %v708 = vpack.c.b16 %v707, %v707
        %709 = vrot.lane.b32.xlu0 %v708, 120
        %v710 = vpop.permute.xlu0 %709
        %v712 = vsel %vm592, %v705, 0
        %v715 = vsel %vm592, %v710, 0
        %717 = vmatprep.subr.bf16.mxu0 0
        %718 = vmatpush1.bf16.xpose.msra.mxu0 %v715
        %719 = vmatprep.subr.bf16.mxu0 0
        %720 = vmatpush1.bf16.xpose.msra.mxu0 0
        %721 = vmatprep.subr.bf16.mxu0 0
        %722 = vmatpush1.bf16.xpose.msra.mxu0 0
        %723 = vmatprep.subr.bf16.mxu0 0
        %724 = vmatpush1.bf16.xpose.msra.mxu0 0
        %725 = vmatprep.subr.bf16.mxu0 0
        %726 = vmatpush1.bf16.xpose.msra.mxu0 0
        %727 = vmatprep.subr.bf16.mxu0 0
        %728 = vmatpush1.bf16.xpose.msra.mxu0 0
        %729 = vmatprep.subr.bf16.mxu0 0
        %730 = vmatpush1.bf16.xpose.msra.mxu0 0
        %731 = vmatprep.subr.bf16.mxu0 0
        %732 = vmatpush1.bf16.xpose.msra.mxu0 0
        %733 = vmatprep.subr.bf16.mxu0 0
        %734 = vmatpush1.bf16.xpose.msra.mxu0 0
        %735 = vmatprep.subr.bf16.mxu0 0
        %736 = vmatpush1.bf16.xpose.msra.mxu0 0
        %737 = vmatprep.subr.bf16.mxu0 0
        %738 = vmatpush1.bf16.xpose.msra.mxu0 0
        %739 = vmatprep.subr.bf16.mxu0 0
        %740 = vmatpush1.bf16.xpose.msra.mxu0 0
        %741 = vmatprep.subr.bf16.mxu0 0
        %742 = vmatpush1.bf16.xpose.msra.mxu0 0
        %743 = vmatprep.subr.bf16.mxu0 0
        %744 = vmatpush1.bf16.xpose.msra.mxu0 0
        %745 = vmatprep.subr.bf16.mxu0 0
        %746 = vmatpush1.bf16.xpose.msra.mxu0 0
        %747 = vmatprep.subr.bf16.mxu0 0
        %748 = vmatpush1.bf16.xpose.msra.mxu0 0
        %749 = vmatprep.mubr.bf16.mxu0 0
        %750 = vmatmul.mubr.bf16.gmra.mrb[0].mxu0 %v712
        %v751 = vpop.f32.mrb[0].mxu0
        %v752 = vadd.f32 0.0, %v751
        %v753 = vpop.f32.mrb[0].mxu0
        %v754 = vpop.f32.mrb[0].mxu0
        %v755 = vpop.f32.mrb[0].mxu0
        %756 = vdwg.mxu0
        %v757 = vmul.f32 %v752, 0.35355338
        %v758 = vsel %vm592, %v757, -inf
        %759 = vmax.xlane.f32.xlu0 %v758
        %v760 = vpop.xlane.xlu0 %759
        %v761 = vsub.f32 %v757, %v760
        %v762 = vmul.f32 %v761, 1.442695
        %v763 = vpow.pop %v762
        %v764 = vsel %vm592, %v763, 0.0
        %765 = vadd.xlane.f32.xlu0 %v764
        %v766 = vpop.xlane.xlu0 %765
        %v767 = vrcp.pop %v766
        %v768 = vmul.f32 %v763, %v767
        %v769 = vpack.c.bf16 %v768, %v768
        %s770 = scalar_lea.vmem %s388, 4 [#allocation11]
        %771 = vst.msk [vmem:[%s770] sm:$0xf] %vm652, %v769
        %v772 = vld [vmem:[#allocation3] sm:$0xf]
        %v774 = vunpack.c.l.b16 %v772
        %v775 = vpack.c.b16 %v774, %v774
        %776 = vrot.lane.b32.xlu0 %v775, 120
        %v777 = vpop.permute.xlu0 %776
        %v779 = vsel %vm592, %v769, 0
        %v782 = vsel %vm658, %v777, 0
        %784 = vmatprep.subr.bf16.mxu0 0
        %785 = vmatpush1.bf16.msra.mxu0 %v782
        %786 = vmatprep.subr.bf16.mxu0 0
        %787 = vmatpush1.bf16.msra.mxu0 0
        %788 = vmatprep.subr.bf16.mxu0 0
        %789 = vmatpush1.bf16.msra.mxu0 0
        %790 = vmatprep.subr.bf16.mxu0 0
        %791 = vmatpush1.bf16.msra.mxu0 0
        %792 = vmatprep.subr.bf16.mxu0 0
        %793 = vmatpush1.bf16.msra.mxu0 0
        %794 = vmatprep.subr.bf16.mxu0 0
        %795 = vmatpush1.bf16.msra.mxu0 0
        %796 = vmatprep.subr.bf16.mxu0 0
        %797 = vmatpush1.bf16.msra.mxu0 0
        %798 = vmatprep.subr.bf16.mxu0 0
        %799 = vmatpush1.bf16.msra.mxu0 0
        %800 = vmatprep.subr.bf16.mxu0 0
        %801 = vmatpush1.bf16.msra.mxu0 0
        %802 = vmatprep.subr.bf16.mxu0 0
        %803 = vmatpush1.bf16.msra.mxu0 0
        %804 = vmatprep.subr.bf16.mxu0 0
        %805 = vmatpush1.bf16.msra.mxu0 0
        %806 = vmatprep.subr.bf16.mxu0 0
        %807 = vmatpush1.bf16.msra.mxu0 0
        %808 = vmatprep.subr.bf16.mxu0 0
        %809 = vmatpush1.bf16.msra.mxu0 0
        %810 = vmatprep.subr.bf16.mxu0 0
        %811 = vmatpush1.bf16.msra.mxu0 0
        %812 = vmatprep.subr.bf16.mxu0 0
        %813 = vmatpush1.bf16.msra.mxu0 0
        %814 = vmatprep.subr.bf16.mxu0 0
        %815 = vmatpush1.bf16.msra.mxu0 0
        %816 = vmatprep.mubr.bf16.mxu0 0
        %817 = vmatmul.mubr.bf16.gmra.mrb[0].mxu0 %v779
        %v818 = vpop.f32.mrb[0].mxu0
        %v819 = vadd.f32 0.0, %v818
        %v820 = vpop.f32.mrb[0].mxu0
        %v821 = vpop.f32.mrb[0].mxu0
        %v822 = vpop.f32.mrb[0].mxu0
        %823 = vdwg.mxu0
        %v824 = vld [vmem:[#allocation2] sm:$0xf]
        %825 = vrot.lane.b32.xlu0 %v590, 112
        %v826 = vpop.permute.xlu0 %825
        %v828 = vunpack.c.l.b16 %v824
        %v829 = vpack.c.b16 %v828, %v828
        %830 = vrot.lane.b32.xlu0 %v829, 112
        %v831 = vpop.permute.xlu0 %830
        %v833 = vsel %vm592, %v826, 0
        %v836 = vsel %vm592, %v831, 0
        %838 = vmatprep.subr.bf16.mxu0 0
        %839 = vmatpush1.bf16.xpose.msra.mxu0 %v836
        %840 = vmatprep.subr.bf16.mxu0 0
        %841 = vmatpush1.bf16.xpose.msra.mxu0 0
        %842 = vmatprep.subr.bf16.mxu0 0
        %843 = vmatpush1.bf16.xpose.msra.mxu0 0
        %844 = vmatprep.subr.bf16.mxu0 0
        %845 = vmatpush1.bf16.xpose.msra.mxu0 0
        %846 = vmatprep.subr.bf16.mxu0 0
        %847 = vmatpush1.bf16.xpose.msra.mxu0 0
        %848 = vmatprep.subr.bf16.mxu0 0
        %849 = vmatpush1.bf16.xpose.msra.mxu0 0
        %850 = vmatprep.subr.bf16.mxu0 0
        %851 = vmatpush1.bf16.xpose.msra.mxu0 0
        %852 = vmatprep.subr.bf16.mxu0 0
        %853 = vmatpush1.bf16.xpose.msra.mxu0 0
        %854 = vmatprep.subr.bf16.mxu0 0
        %855 = vmatpush1.bf16.xpose.msra.mxu0 0
        %856 = vmatprep.subr.bf16.mxu0 0
        %857 = vmatpush1.bf16.xpose.msra.mxu0 0
        %858 = vmatprep.subr.bf16.mxu0 0
        %859 = vmatpush1.bf16.xpose.msra.mxu0 0
        %860 = vmatprep.subr.bf16.mxu0 0
        %861 = vmatpush1.bf16.xpose.msra.mxu0 0
        %862 = vmatprep.subr.bf16.mxu0 0
        %863 = vmatpush1.bf16.xpose.msra.mxu0 0
        %864 = vmatprep.subr.bf16.mxu0 0
        %865 = vmatpush1.bf16.xpose.msra.mxu0 0
        %866 = vmatprep.subr.bf16.mxu0 0
        %867 = vmatpush1.bf16.xpose.msra.mxu0 0
        %868 = vmatprep.subr.bf16.mxu0 0
        %869 = vmatpush1.bf16.xpose.msra.mxu0 0
        %870 = vmatprep.mubr.bf16.mxu0 0
        %871 = vmatmul.mubr.bf16.gmra.mrb[0].mxu0 %v833
        %v872 = vpop.f32.mrb[0].mxu0
        %v873 = vadd.f32 0.0, %v872
        %v874 = vpop.f32.mrb[0].mxu0
        %v875 = vpop.f32.mrb[0].mxu0
        %v876 = vpop.f32.mrb[0].mxu0
        %877 = vdwg.mxu0
        %v878 = vmul.f32 %v873, 0.35355338
        %v879 = vsel %vm592, %v878, -inf
        %880 = vmax.xlane.f32.xlu0 %v879
        %v881 = vpop.xlane.xlu0 %880
        %v882 = vsub.f32 %v878, %v881
        %v883 = vmul.f32 %v882, 1.442695
        %v884 = vpow.pop %v883
        %v885 = vsel %vm592, %v884, 0.0
        %886 = vadd.xlane.f32.xlu0 %v885
        %v887 = vpop.xlane.xlu0 %886
        %v888 = vrcp.pop %v887
        %v889 = vmul.f32 %v884, %v888
        %v890 = vpack.c.bf16 %v889, %v889
        %s891 = scalar_lea.vmem %s388, 8 [#allocation11]
        %892 = vst.msk [vmem:[%s891] sm:$0xf] %vm652, %v890
        %v893 = vld [vmem:[#allocation3] sm:$0xf]
        %v895 = vunpack.c.l.b16 %v893
        %v896 = vpack.c.b16 %v895, %v895
        %897 = vrot.lane.b32.xlu0 %v896, 112
        %v898 = vpop.permute.xlu0 %897
        %v900 = vsel %vm592, %v890, 0
        %v903 = vsel %vm658, %v898, 0
        %905 = vmatprep.subr.bf16.mxu0 0
        %906 = vmatpush1.bf16.msra.mxu0 %v903
        %907 = vmatprep.subr.bf16.mxu0 0
        %908 = vmatpush1.bf16.msra.mxu0 0
        %909 = vmatprep.subr.bf16.mxu0 0
        %910 = vmatpush1.bf16.msra.mxu0 0
        %911 = vmatprep.subr.bf16.mxu0 0
        %912 = vmatpush1.bf16.msra.mxu0 0
        %913 = vmatprep.subr.bf16.mxu0 0
        %914 = vmatpush1.bf16.msra.mxu0 0
        %915 = vmatprep.subr.bf16.mxu0 0
        %916 = vmatpush1.bf16.msra.mxu0 0
        %917 = vmatprep.subr.bf16.mxu0 0
        %918 = vmatpush1.bf16.msra.mxu0 0
        %919 = vmatprep.subr.bf16.mxu0 0
        %920 = vmatpush1.bf16.msra.mxu0 0
        %921 = vmatprep.subr.bf16.mxu0 0
        %922 = vmatpush1.bf16.msra.mxu0 0
        %923 = vmatprep.subr.bf16.mxu0 0
        %924 = vmatpush1.bf16.msra.mxu0 0
        %925 = vmatprep.subr.bf16.mxu0 0
        %926 = vmatpush1.bf16.msra.mxu0 0
        %927 = vmatprep.subr.bf16.mxu0 0
        %928 = vmatpush1.bf16.msra.mxu0 0
        %929 = vmatprep.subr.bf16.mxu0 0
        %930 = vmatpush1.bf16.msra.mxu0 0
        %931 = vmatprep.subr.bf16.mxu0 0
        %932 = vmatpush1.bf16.msra.mxu0 0
        %933 = vmatprep.subr.bf16.mxu0 0
        %934 = vmatpush1.bf16.msra.mxu0 0
        %935 = vmatprep.subr.bf16.mxu0 0
        %936 = vmatpush1.bf16.msra.mxu0 0
        %937 = vmatprep.mubr.bf16.mxu0 0
        %938 = vmatmul.mubr.bf16.gmra.mrb[0].mxu0 %v900
        %v939 = vpop.f32.mrb[0].mxu0
        %v940 = vadd.f32 0.0, %v939
        %v941 = vpop.f32.mrb[0].mxu0
        %v942 = vpop.f32.mrb[0].mxu0
        %v943 = vpop.f32.mrb[0].mxu0
        %944 = vdwg.mxu0
        %v945 = vld [vmem:[#allocation2] sm:$0xf]
        %946 = vrot.lane.b32.xlu0 %v590, 104
        %v947 = vpop.permute.xlu0 %946
        %v949 = vunpack.c.l.b16 %v945
        %v950 = vpack.c.b16 %v949, %v949
        %951 = vrot.lane.b32.xlu0 %v950, 104
        %v952 = vpop.permute.xlu0 %951
        %v954 = vsel %vm592, %v947, 0
        %v957 = vsel %vm592, %v952, 0
        %959 = vmatprep.subr.bf16.mxu0 0
        %960 = vmatpush1.bf16.xpose.msra.mxu0 %v957
        %961 = vmatprep.subr.bf16.mxu0 0
        %962 = vmatpush1.bf16.xpose.msra.mxu0 0
        %963 = vmatprep.subr.bf16.mxu0 0
        %964 = vmatpush1.bf16.xpose.msra.mxu0 0
        %965 = vmatprep.subr.bf16.mxu0 0
        %966 = vmatpush1.bf16.xpose.msra.mxu0 0
        %967 = vmatprep.subr.bf16.mxu0 0
        %968 = vmatpush1.bf16.xpose.msra.mxu0 0
        %969 = vmatprep.subr.bf16.mxu0 0
        %970 = vmatpush1.bf16.xpose.msra.mxu0 0
        %971 = vmatprep.subr.bf16.mxu0 0
        %972 = vmatpush1.bf16.xpose.msra.mxu0 0
        %973 = vmatprep.subr.bf16.mxu0 0
        %974 = vmatpush1.bf16.xpose.msra.mxu0 0
        %975 = vmatprep.subr.bf16.mxu0 0
        %976 = vmatpush1.bf16.xpose.msra.mxu0 0
        %977 = vmatprep.subr.bf16.mxu0 0
        %978 = vmatpush1.bf16.xpose.msra.mxu0 0
        %979 = vmatprep.subr.bf16.mxu0 0
        %980 = vmatpush1.bf16.xpose.msra.mxu0 0
        %981 = vmatprep.subr.bf16.mxu0 0
        %982 = vmatpush1.bf16.xpose.msra.mxu0 0
        %983 = vmatprep.subr.bf16.mxu0 0
        %984 = vmatpush1.bf16.xpose.msra.mxu0 0
        %985 = vmatprep.subr.bf16.mxu0 0
        %986 = vmatpush1.bf16.xpose.msra.mxu0 0
        %987 = vmatprep.subr.bf16.mxu0 0
        %988 = vmatpush1.bf16.xpose.msra.mxu0 0
        %989 = vmatprep.subr.bf16.mxu0 0
        %990 = vmatpush1.bf16.xpose.msra.mxu0 0
        %991 = vmatprep.mubr.bf16.mxu0 0
        %992 = vmatmul.mubr.bf16.gmra.mrb[0].mxu0 %v954
        %v993 = vpop.f32.mrb[0].mxu0
        %v994 = vadd.f32 0.0, %v993
        %v995 = vpop.f32.mrb[0].mxu0
        %v996 = vpop.f32.mrb[0].mxu0
        %v997 = vpop.f32.mrb[0].mxu0
        %998 = vdwg.mxu0
        %v999 = vmul.f32 %v994, 0.35355338
        %v1000 = vsel %vm592, %v999, -inf
        %1001 = vmax.xlane.f32.xlu0 %v1000
        %v1002 = vpop.xlane.xlu0 %1001
        %v1003 = vsub.f32 %v999, %v1002
        %v1004 = vmul.f32 %v1003, 1.442695
        %v1005 = vpow.pop %v1004
        %v1006 = vsel %vm592, %v1005, 0.0
        %1007 = vadd.xlane.f32.xlu0 %v1006
        %v1008 = vpop.xlane.xlu0 %1007
        %v1009 = vrcp.pop %v1008
        %v1010 = vmul.f32 %v1005, %v1009
        %v1011 = vpack.c.bf16 %v1010, %v1010
        %s1012 = scalar_lea.vmem %s388, 12 [#allocation11]
        %1013 = vst.msk [vmem:[%s1012] sm:$0xf] %vm652, %v1011
        %v1014 = vld [vmem:[#allocation3] sm:$0xf]
        %v1016 = vunpack.c.l.b16 %v1014
        %v1017 = vpack.c.b16 %v1016, %v1016
        %1018 = vrot.lane.b32.xlu0 %v1017, 104
        %v1019 = vpop.permute.xlu0 %1018
        %v1021 = vsel %vm592, %v1011, 0
        %v1024 = vsel %vm658, %v1019, 0
        %1026 = vmatprep.subr.bf16.mxu0 0
        %1027 = vmatpush1.bf16.msra.mxu0 %v1024
        %1028 = vmatprep.subr.bf16.mxu0 0
        %1029 = vmatpush1.bf16.msra.mxu0 0
        %1030 = vmatprep.subr.bf16.mxu0 0
        %1031 = vmatpush1.bf16.msra.mxu0 0
        %1032 = vmatprep.subr.bf16.mxu0 0
        %1033 = vmatpush1.bf16.msra.mxu0 0
        %1034 = vmatprep.subr.bf16.mxu0 0
        %1035 = vmatpush1.bf16.msra.mxu0 0
        %1036 = vmatprep.subr.bf16.mxu0 0
        %1037 = vmatpush1.bf16.msra.mxu0 0
        %1038 = vmatprep.subr.bf16.mxu0 0
        %1039 = vmatpush1.bf16.msra.mxu0 0
        %1040 = vmatprep.subr.bf16.mxu0 0
        %1041 = vmatpush1.bf16.msra.mxu0 0
        %1042 = vmatprep.subr.bf16.mxu0 0
        %1043 = vmatpush1.bf16.msra.mxu0 0
        %1044 = vmatprep.subr.bf16.mxu0 0
        %1045 = vmatpush1.bf16.msra.mxu0 0
        %1046 = vmatprep.subr.bf16.mxu0 0
        %1047 = vmatpush1.bf16.msra.mxu0 0
        %1048 = vmatprep.subr.bf16.mxu0 0
        %1049 = vmatpush1.bf16.msra.mxu0 0
        %1050 = vmatprep.subr.bf16.mxu0 0
        %1051 = vmatpush1.bf16.msra.mxu0 0
        %1052 = vmatprep.subr.bf16.mxu0 0
        %1053 = vmatpush1.bf16.msra.mxu0 0
        %1054 = vmatprep.subr.bf16.mxu0 0
        %1055 = vmatpush1.bf16.msra.mxu0 0
        %1056 = vmatprep.subr.bf16.mxu0 0
        %1057 = vmatpush1.bf16.msra.mxu0 0
        %1058 = vmatprep.mubr.bf16.mxu0 0
        %1059 = vmatmul.mubr.bf16.gmra.mrb[0].mxu0 %v1021
        %v1060 = vpop.f32.mrb[0].mxu0
        %v1061 = vadd.f32 0.0, %v1060
        %v1062 = vpop.f32.mrb[0].mxu0
        %v1063 = vpop.f32.mrb[0].mxu0
        %v1064 = vpop.f32.mrb[0].mxu0
        %1065 = vdwg.mxu0
        %1067 = vrot.lane.b32.xlu0 %v819, 8
        %v1068 = vpop.permute.xlu0 %1067
        %1071 = vrot.lane.b32.xlu0 %v940, 16
        %v1072 = vpop.permute.xlu0 %1071
        %1075 = vrot.lane.b32.xlu0 %v1061, 24
        %v1076 = vpop.permute.xlu0 %1075
        %v1078 = vsel %vm592, %v697, %v1068
        %vm1079 = vcmask 130048
        %v1080 = vsel %vm1079, %v1078, %v1072
        %vm1081 = vcmask 195584
        %v1082 = vsel %vm1081, %v1080, %v1076
        %v1083 = vpack.c.bf16 %v1082, %v1082
        %v1084 = vld [vmem:[#allocation9] sm:$0xf]
        %v1085 = vld [vmem:[#allocation9 + $0x4] sm:$0xf]
        %v1086 = vld [vmem:[#allocation9 + $0x8] sm:$0xf]
        %v1087 = vld [vmem:[#allocation9 + $0xc] sm:$0xf]
        %v1092 = vunpack.c.l.b16 %v1084
        %v1093 = vunpack.c.l.b16 %v1085
        %v1094 = vunpack.c.l.b16 %v1086
        %v1095 = vunpack.c.l.b16 %v1087
        %v1096 = vpack.c.b16 %v1093, %v1092
        %v1097 = vpack.c.b16 %v1095, %v1094
        %v1101 = vsel %vm546, %v1083, 0
        %1103 = vmatprep.subr.bf16.mxu0 0
        %1104 = vmatpush1.bf16.msra.mxu0 %v1096
        %1105 = vmatprep.subr.bf16.mxu0 0
        %1106 = vmatpush1.bf16.msra.mxu0 %v1097
        %1107 = vmatprep.subr.bf16.mxu0 0
        %1108 = vmatpush1.bf16.msra.mxu0 0
        %1109 = vmatprep.subr.bf16.mxu0 0
        %1110 = vmatpush1.bf16.msra.mxu0 0
        %1111 = vmatprep.subr.bf16.mxu0 0
        %1112 = vmatpush1.bf16.msra.mxu0 0
        %1113 = vmatprep.subr.bf16.mxu0 0
        %1114 = vmatpush1.bf16.msra.mxu0 0
        %1115 = vmatprep.subr.bf16.mxu0 0
        %1116 = vmatpush1.bf16.msra.mxu0 0
        %1117 = vmatprep.subr.bf16.mxu0 0
        %1118 = vmatpush1.bf16.msra.mxu0 0
        %1119 = vmatprep.subr.bf16.mxu0 0
        %1120 = vmatpush1.bf16.msra.mxu0 0
        %1121 = vmatprep.subr.bf16.mxu0 0
        %1122 = vmatpush1.bf16.msra.mxu0 0
        %1123 = vmatprep.subr.bf16.mxu0 0
        %1124 = vmatpush1.bf16.msra.mxu0 0
        %1125 = vmatprep.subr.bf16.mxu0 0
        %1126 = vmatpush1.bf16.msra.mxu0 0
        %1127 = vmatprep.subr.bf16.mxu0 0
        %1128 = vmatpush1.bf16.msra.mxu0 0
        %1129 = vmatprep.subr.bf16.mxu0 0
        %1130 = vmatpush1.bf16.msra.mxu0 0
        %1131 = vmatprep.subr.bf16.mxu0 0
        %1132 = vmatpush1.bf16.msra.mxu0 0
        %1133 = vmatprep.subr.bf16.mxu0 0
        %1134 = vmatpush1.bf16.msra.mxu0 0
        %1135 = vmatprep.mubr.bf16.mxu0 0
        %1136 = vmatmul.mubr.bf16.gmra.mrb[0].mxu0 %v1101
        %v1137 = vpop.f32.mrb[0].mxu0
        %v1138 = vadd.f32 0.0, %v1137
        %v1139 = vpop.f32.mrb[0].mxu0
        %v1140 = vpop.f32.mrb[0].mxu0
        %v1141 = vpop.f32.mrb[0].mxu0
        %1142 = vdwg.mxu0
        %v1143 = vmax.f32 %v1138, 0.0
        %v1144 = vpack.c.bf16 %v1143, %v1143
        %v1145 = vld [vmem:[%s6] sm:$0xf]
        %v1146 = vld [vmem:[%s6 + $0x4] sm:$0xf]
        %v1147 = vld [vmem:[%s6 + $0x8] sm:$0xf]
        %v1148 = vld [vmem:[%s6 + $0xc] sm:$0xf]
        %v1149 = vld [vmem:[%s6 + $0x10] sm:$0xf]
        %v1150 = vld [vmem:[%s6 + $0x14] sm:$0xf]
        %v1151 = vld [vmem:[%s6 + $0x18] sm:$0xf]
        %v1152 = vld [vmem:[%s6 + $0x1c] sm:$0xf]
        %v1161 = vunpack.c.l.b16 %v1145
        %v1162 = vunpack.c.l.b16 %v1146
        %v1163 = vunpack.c.l.b16 %v1147
        %v1164 = vunpack.c.l.b16 %v1148
        %v1165 = vunpack.c.l.b16 %v1149
        %v1166 = vunpack.c.l.b16 %v1150
        %v1167 = vunpack.c.l.b16 %v1151
        %v1168 = vunpack.c.l.b16 %v1152
        %v1169 = vpack.c.b16 %v1162, %v1161
        %v1170 = vpack.c.b16 %v1164, %v1163
        %v1171 = vpack.c.b16 %v1166, %v1165
        %v1172 = vpack.c.b16 %v1168, %v1167
        %vm1177 = vcmask 523264
        %v1179 = vsel %vm1177, %v1144, 0
        %1181 = vmatprep.subr.bf16.mxu0 0
        %1182 = vmatpush1.bf16.msra.mxu0 %v1169
        %1183 = vmatprep.subr.bf16.mxu0 0
        %1184 = vmatpush1.bf16.msra.mxu0 %v1170
        %1185 = vmatprep.subr.bf16.mxu0 0
        %1186 = vmatpush1.bf16.msra.mxu0 %v1171
        %1187 = vmatprep.subr.bf16.mxu0 0
        %1188 = vmatpush1.bf16.msra.mxu0 %v1172
        %1189 = vmatprep.subr.bf16.mxu0 0
        %1190 = vmatpush1.bf16.msra.mxu0 0
        %1191 = vmatprep.subr.bf16.mxu0 0
        %1192 = vmatpush1.bf16.msra.mxu0 0
        %1193 = vmatprep.subr.bf16.mxu0 0
        %1194 = vmatpush1.bf16.msra.mxu0 0
        %1195 = vmatprep.subr.bf16.mxu0 0
        %1196 = vmatpush1.bf16.msra.mxu0 0
        %1197 = vmatprep.subr.bf16.mxu0 0
        %1198 = vmatpush1.bf16.msra.mxu0 0
        %1199 = vmatprep.subr.bf16.mxu0 0
        %1200 = vmatpush1.bf16.msra.mxu0 0
        %1201 = vmatprep.subr.bf16.mxu0 0
        %1202 = vmatpush1.bf16.msra.mxu0 0
        %1203 = vmatprep.subr.bf16.mxu0 0
        %1204 = vmatpush1.bf16.msra.mxu0 0
        %1205 = vmatprep.subr.bf16.mxu0 0
        %1206 = vmatpush1.bf16.msra.mxu0 0
        %1207 = vmatprep.subr.bf16.mxu0 0
        %1208 = vmatpush1.bf16.msra.mxu0 0
        %1209 = vmatprep.subr.bf16.mxu0 0
        %1210 = vmatpush1.bf16.msra.mxu0 0
        %1211 = vmatprep.subr.bf16.mxu0 0
        %1212 = vmatpush1.bf16.msra.mxu0 0
        %1213 = vmatprep.mubr.bf16.mxu0 0
        %1214 = vmatmul.mubr.bf16.gmra.mrb[0].mxu0 %v1179
        %v1215 = vpop.f32.mrb[0].mxu0
        %v1216 = vadd.f32 %v1082, %v1215
        %v1217 = vpop.f32.mrb[0].mxu0
        %v1218 = vpop.f32.mrb[0].mxu0
        %v1219 = vpop.f32.mrb[0].mxu0
        %1220 = vdwg.mxu0
        %v1221 = vsel %vm546, %v1216, 0.0
        %1222 = vadd.xlane.f32.xlu0 %v1221
        %v1223 = vpop.xlane.xlu0 %1222
        %v1224 = vrcp.pop 32.0
        %v1225 = vmul.f32 %v1223, %v1224
        %v1226 = vsub.f32 %v1216, %v1225
        %v1227 = vmul.f32 %v1226, %v1226
        %v1228 = vsel %vm546, %v1227, 0.0
        %1229 = vadd.xlane.f32.xlu0 %v1228
        %v1230 = vpop.xlane.xlu0 %1229
        %v1231 = vmul.f32 %v1230, %v1224
        %v1232 = vadd.f32 %v1231, 1e-05
        %v1233 = vrsqrt.pop %v1232
        %v1234 = vmul.f32 %v1226, %v1233
        %1235 = vst.msk [vmem:[%s381] sm:$0xff] %vm546, %v1234
        %s1236 = sand.u32 %s209, 1
        %s1237 = scalar_lea.sflag [#allocation6], %s1236
        %s1238 = sand.u32 %s209, 1
        %s1239 = smul.addr %s1238, 8
        %s1240 = scalar_lea.vmem [#allocation10], %s1239
        %s1241 = sand.u32 %s237, 1
        %s1242 = scalar_lea.sflag [#allocation12], %s1241
        %s1243 = sand.u32 %s237, 1
        %s1244 = smul.addr %s1243, 16
        %s1245 = scalar_lea.vmem [#allocation11], %s1244
        // Predicated region
        $region65: #{tpu_custom_call.1} parent=47 // pred_check
          %p1246 = pneg %p219
        $region66: #{tpu_custom_call.1} parent=47 // pred_check_branch
          %1248 = sbr.rel (%p1246) target = $region68
        $region67: #{tpu_custom_call.1} parent=47 // pred_region
          %s1250 = ssub.s32 128, 128
          %1251 = vsyncadd %s1237, %s1250
          %s1252 = sadd.s32 %s33, %s32
          %s1253 = smul.addr %s1252, 128
          %s1254 = scalar_lea.hbm %s7, %s1253
          %s1256 = sshll.u32 %s1240, 4
          %s1257 = int_to_ptr.vmem [resolvable:$true] %s1256
          %1259 = dma.vmem_to_hbm [thread:$0]  %s1257, 128, %s1254, %s1237
        $region68: #{tpu_custom_call.1} parent=47 // pred_fallthru
          _
        // Predicated region
        $region69: #{tpu_custom_call.1} parent=47 // pred_check
          %p1260 = pneg %p247
        $region70: #{tpu_custom_call.1} parent=47 // pred_check_branch
          %1262 = sbr.rel (%p1260) target = $region72
        $region71: #{tpu_custom_call.1} parent=47 // pred_region
          %s1264 = ssub.s32 256, 256
          %1265 = vsyncadd %s1242, %s1264
          %s1266 = smul.addr %s32, 4
          %s1267 = sadd.s32 %s33, %s1266
          %s1268 = smul.addr %s1267, 64
          %s1269 = scalar_lea.hbm %s8, %s1268
          %s1270 = sshll.u32 %s1245, 4
          %s1271 = int_to_ptr.vmem [resolvable:$true] %s1270
          %1276 = dma.vmem_to_hbm [thread:$0]  %s1271, 256, %s1269, %s1242, 64, 64, 4
        $region72: #{tpu_custom_call.1} parent=47 // pred_fallthru
          _
      $region48: #{tpu_custom_call.1} parent=5 // pred_fallthru
        _
      %p1277 = scmp.le.s32.totalorder 2, %s23
      // Predicated region
      $region73: #{tpu_custom_call.1} parent=5 // pred_check
        %p1278 = pneg %p1277
      $region74: #{tpu_custom_call.1} parent=5 // pred_check_branch
        %1280 = sbr.rel (%p1278) target = $region76
      $region75: #{tpu_custom_call.1} parent=5 // pred_region
        %s1281 = ssub.s32 %s23, 2
        // Predicated region
        $region77: #{tpu_custom_call.1} parent=75 // pred_check
          %p1282 = pneg %p225
        $region78: #{tpu_custom_call.1} parent=75 // pred_check_branch
          %1284 = sbr.rel (%p1282) target = $region80
        $region79: #{tpu_custom_call.1} parent=75 // pred_region
          %s1285 = sand.u32 %s210, 1
          %s1286 = scalar_lea.sflag [#allocation6], %s1285
          %s1287 = sand.u32 %s210, 1
          %s1288 = smul.addr %s1287, 8
          %s1289 = scalar_lea.vmem [#allocation10], %s1288
          %1290 = dma.done %s1286, 128
        $region80: #{tpu_custom_call.1} parent=75 // pred_fallthru
          _
        // Predicated region
        $region81: #{tpu_custom_call.1} parent=75 // pred_check
          %p1291 = pneg %p253
        $region82: #{tpu_custom_call.1} parent=75 // pred_check_branch
          %1293 = sbr.rel (%p1291) target = $region84
        $region83: #{tpu_custom_call.1} parent=75 // pred_region
          %s1294 = sand.u32 %s238, 1
          %s1295 = scalar_lea.sflag [#allocation12], %s1294
          %s1296 = sand.u32 %s238, 1
          %s1297 = smul.addr %s1296, 16
          %s1298 = scalar_lea.vmem [#allocation11], %s1297
          %1299 = dma.done %s1295, 256
        $region84: #{tpu_custom_call.1} parent=75 // pred_fallthru
          _
      $region76: #{tpu_custom_call.1} parent=5 // pred_fallthru
        _
    $region6: #{tpu_custom_call.1} parent=1 // loop_footer
      %s27 = sadd.s32 1, %s23
    $region7: #{tpu_custom_call.1} parent=1 // loop_footer_branch
      %22 = sbr.rel target = $region3
    $region8: #{tpu_custom_call.1} parent=1 // loop_exit
      _
    %1300 = vsyncpa [#allocation5], 1
    %s1301 = scalar_lea.sflag [#allocation5], 1
    %1302 = vsyncpa %s1301, 1
    %1303 = vsyncpa [#allocation8], 1
    %1304 = vsyncpa [#allocation6], 1
    %s1305 = scalar_lea.sflag [#allocation6], 1
    %1306 = vsyncpa %s1305, 1
    %1307 = vsyncpa [#allocation12], 1
    %s1308 = scalar_lea.sflag [#allocation12], 1
    %1309 = vsyncpa %s1308, 1

</llo_original>
